<compile_context>
chip_gen: v7x
topology: tpu7x:2x2x1
jax: 0.10.0
libtpu: 0.0.40
codegen_flags: <defaults>
</compile_context>

<pallas_src>
import functools

import jax
import jax.numpy as jnp
from jax import lax
from jax.experimental import pallas as pl
from jax.experimental.pallas import tpu as pltpu


# ---------------------------------------------------------------------------
# Fused kernel: conv1+relu -> encoder layer -> LN -> conv2 -> log_softmax
# ---------------------------------------------------------------------------

def _hubgnn_fused_kernel(a_ref, x_ref, vec_ref, w1_ref, wenc_ref, w2_ref, o_ref,
                         *, eps, out_valid):
    f32 = jnp.float32
    bf16 = jnp.bfloat16

    in_f = x_ref.shape[1]
    H = w1_ref.shape[1]                  # n_units (128)
    ffn = wenc_ref.shape[1] - 4 * H      # FFN hidden width (2H)
    out_pad = o_ref.shape[1]

    a = a_ref[...]
    if a.dtype != bf16:                  # static (trace-time) branch
        a = a.astype(bf16)
    x = x_ref[...].astype(bf16)

    def vec(row, width=H):
        # static row / lane slice of the packed (16, 256) f32 bias/scale slab
        return vec_ref[row:row + 1, :width]

    # ---- SAGEConv 1 ('mean') + ReLU (dropout p=0.2 is identity in eval) -----
    agg1 = jnp.dot(a, x, preferred_element_type=f32).astype(bf16)      # A @ X
    h1 = (jnp.dot(x, w1_ref[:in_f, :], preferred_element_type=f32)
          + jnp.dot(agg1, w1_ref[in_f:, :], preferred_element_type=f32)
          + vec(0))
    h1 = jnp.maximum(h1, 0.0)                                          # (N,H) f32
    h1b = h1.astype(bf16)

    # ---- Transformer encoder layer (post-norm, 1 head) ----------------------
    # fused QKV projection; wq (and bq) already carry the 1/sqrt(H) scale
    qkv = jnp.dot(h1b, wenc_ref[:, :3 * H], preferred_element_type=f32)
    q = (qkv[:, 0 * H:1 * H] + vec(1)).astype(bf16)
    k = (qkv[:, 1 * H:2 * H] + vec(2)).astype(bf16)
    v = (qkv[:, 2 * H:3 * H] + vec(3)).astype(bf16)

    # scores: contract last dims of q, k directly (no k.T relayout)
    s = lax.dot_general(q, k, dimension_numbers=(((1,), (1,)), ((), ())),
                        preferred_element_type=f32)                    # (N, N)
    m = jnp.max(s, axis=-1, keepdims=True)
    p = jnp.exp(s - m)
    p = p * pl.reciprocal(jnp.sum(p, axis=-1, keepdims=True), approx=True)

    attn = jnp.dot(p.astype(bf16), v, preferred_element_type=f32)
    attn = (jnp.dot(attn.astype(bf16), wenc_ref[:, 3 * H:4 * H],
                    preferred_element_type=f32) + vec(4))

    # residual + LayerNorm 1
    y = h1 + attn
    mu = jnp.mean(y, axis=-1, keepdims=True)
    var = jnp.mean((y - mu) ** 2, axis=-1, keepdims=True)
    y = (y - mu) * lax.rsqrt(var + eps) * vec(5) + vec(6)

    # FFN + residual + LayerNorm 2
    ff = jnp.maximum(
        jnp.dot(y.astype(bf16), wenc_ref[:, 4 * H:4 * H + ffn],
                preferred_element_type=f32) + vec(7, ffn), 0.0)
    ff = (jnp.dot(ff.astype(bf16), w2_ref[:, :H],
                  preferred_element_type=f32) + vec(8))
    z = y + ff
    mu2 = jnp.mean(z, axis=-1, keepdims=True)
    var2 = jnp.mean((z - mu2) ** 2, axis=-1, keepdims=True)
    x_gm = (z - mu2) * lax.rsqrt(var2 + eps) * vec(9) + vec(10)

    # ---- LayerNorm(128) on the conv1 branch ----------------------------------
    mu3 = jnp.mean(h1, axis=-1, keepdims=True)
    var3 = jnp.mean((h1 - mu3) ** 2, axis=-1, keepdims=True)
    xln = (h1 - mu3) * lax.rsqrt(var3 + eps) * vec(11) + vec(12)

    # ---- SAGEConv 2 ('mean') on concat([xln, x_gm]) --------------------------
    # single K=2H contraction produces both the self path and the
    # pre-aggregation neighbour path; neighbour path reassociated: A @ (xc@Wn2)
    xc2 = jnp.concatenate([xln.astype(bf16), x_gm.astype(bf16)], axis=1)
    zz = jnp.dot(xc2, w2_ref[:, H:], preferred_element_type=f32)  # (N, 2*out_pad)
    z_neigh = jnp.dot(a, zz[:, out_pad:].astype(bf16), preferred_element_type=f32)
    logits = zz[:, :out_pad] + z_neigh + vec(13, out_pad)

    # masked log_softmax over the real out_feats lanes only
    col = lax.broadcasted_iota(jnp.int32, logits.shape, 1)
    logits = jnp.where(col < out_valid, logits, -jnp.inf)
    m2 = jnp.max(logits, axis=-1, keepdims=True)
    lse = jnp.log(jnp.sum(jnp.exp(logits - m2), axis=-1, keepdims=True))
    o_ref[...] = logits - m2 - lse


# ---------------------------------------------------------------------------
# Wrapper: packed parameter slabs + grid-free pallas_call
# ---------------------------------------------------------------------------

def _round_up(x, m):
    return ((x + m - 1) // m) * m


class HubGNNPallas:
    N_VEC_ROWS = 16   # 14 used rows, padded to a sublane multiple

    def __init__(self, key, n_nodes, in_feats, out_feats, n_units=128,
                 ffn_units=256, eps=1e-5):
        assert n_units == 128, "torch.nn.LayerNorm(128) fixes n_units to 128"
        assert ffn_units == 2 * n_units, "packed W2 slab assumes ffn == 2*n_units"
        assert out_feats <= 128, "b2 row of the vector slab assumes out_pad == 128"
        self.eps = float(eps)
        self.n_units = n_units
        self.out_feats = out_feats
        self.out_pad = _round_up(out_feats, 128)
        H = n_units
        scale = 1.0 / float(H) ** 0.5
        ks = jax.random.split(key, 16)

        def init(k, shape, fan_in):
            return (jax.random.normal(k, shape, jnp.float32)
                    / jnp.sqrt(jnp.float32(fan_in)))

        # --- raw f32 parameters (same semantics as the torch module) ----------
        ws1 = init(ks[0], (in_feats, H), in_feats)       # SAGE-1 self
        wn1 = init(ks[1], (in_feats, H), in_feats)       # SAGE-1 neigh
        b1 = jnp.zeros((H,), jnp.float32)

        wq = init(ks[2], (H, H), H)
        bq = jnp.zeros((H,), jnp.float32)
        wk = init(ks[3], (H, H), H)
        bk = jnp.zeros((H,), jnp.float32)
        wv = init(ks[4], (H, H), H)
        bv = jnp.zeros((H,), jnp.float32)
        wo = init(ks[5], (H, H), H)
        bo = jnp.zeros((H,), jnp.float32)
        g1 = jnp.ones((H,), jnp.float32)
        be1 = jnp.zeros((H,), jnp.float32)
        w_ff1 = init(ks[6], (H, ffn_units), H)
        b_ff1 = jnp.zeros((ffn_units,), jnp.float32)
        w_ff2 = init(ks[7], (ffn_units, H), ffn_units)
        b_ff2 = jnp.zeros((H,), jnp.float32)
        g2 = jnp.ones((H,), jnp.float32)
        be2 = jnp.zeros((H,), jnp.float32)

        g_ln = jnp.ones((H,), jnp.float32)               # standalone LN(128)
        b_ln = jnp.zeros((H,), jnp.float32)

        def pad_cols(w):                                  # lane-dense out width
            return jnp.pad(w, ((0, 0), (0, self.out_pad - out_feats)))

        ws2a = pad_cols(init(ks[8], (H, out_feats), 2 * H))   # xln -> self
        ws2b = pad_cols(init(ks[9], (H, out_feats), 2 * H))   # x_gm -> self
        wn2a = pad_cols(init(ks[10], (H, out_feats), 2 * H))  # xln -> neigh
        wn2b = pad_cols(init(ks[11], (H, out_feats), 2 * H))  # x_gm -> neigh
        b2 = jnp.zeros((self.out_pad,), jnp.float32)

        # --- packed bf16 weight slabs (one-time init transform) ---------------
        bf16 = jnp.bfloat16
        # SAGE-1 weights stacked along K: rows [:in_feats]=self, [in_feats:]=neigh
        self.w1 = jnp.concatenate([ws1, wn1], axis=0).astype(bf16)      # (2*in, H)
        # encoder K=H slab: [wq*scale | wk | wv | wo | w_ff1]
        self.wenc = jnp.concatenate(
            [wq * scale, wk, wv, wo, w_ff1], axis=1).astype(bf16)       # (H, 4H+ffn)
        # K=2H slab: [w_ff2 | Wself2(stacked) | Wneigh2(stacked)]
        self.w2 = jnp.concatenate(
            [w_ff2,
             jnp.concatenate([ws2a, ws2b], axis=0),
             jnp.concatenate([wn2a, wn2b], axis=0)], axis=1).astype(bf16)

        # --- packed bias / gamma / beta slab (f32), indexed by static rows ----
        vec_w = max(2 * H, self.out_pad)
        rows = [b1, bq * scale, bk, bv, bo, g1, be1, b_ff1, b_ff2,
                g2, be2, g_ln, b_ln, b2]
        vec = jnp.zeros((self.N_VEC_ROWS, vec_w), jnp.float32)
        for i, r in enumerate(rows):
            vec = vec.at[i, :r.shape[0]].set(r)
        self.vec = vec

    def __call__(self, a_norm, x):
        n_nodes = x.shape[0]
        kernel = functools.partial(_hubgnn_fused_kernel, eps=self.eps,
                                   out_valid=self.out_feats)
        inputs = (a_norm, x, self.vec, self.w1, self.wenc, self.w2)

        vmem = pl.BlockSpec(memory_space=pltpu.MemorySpace.VMEM)
        out_padded = pl.pallas_call(
            kernel,
            out_shape=jax.ShapeDtypeStruct((n_nodes, self.out_pad), jnp.float32),
            in_specs=[vmem] * len(inputs),
            out_specs=vmem,
        )(*inputs)

        # drop lane-padding columns (padded log-probs are -inf, unused)
        return out_padded[:, :self.out_feats]


def make_ring_graph(n_nodes, dtype=jnp.bfloat16):
    """Deterministic bidirectional ring graph, row-normalized ('mean' agg)."""
    a = jnp.zeros((n_nodes, n_nodes), jnp.float32)
    idx = jnp.arange(n_nodes)
    a = a.at[idx, (idx + 1) % n_nodes].set(1.0)
    a = a.at[idx, (idx - 1) % n_nodes].set(1.0)
    deg = jnp.maximum(jnp.sum(a, axis=1, keepdims=True), 1.0)
    return (a / deg).astype(dtype)


if __name__ == "__main__":
    key = jax.random.PRNGKey(0)
    k_param, k_x = jax.random.split(key)

    n_nodes, in_feats, n_units, out_feats = 8, 16, 128, 8

    model = HubGNNPallas(k_param, n_nodes, in_feats, out_feats, n_units=n_units)
    a_norm = make_ring_graph(n_nodes)                      # (8, 8) bf16
    x = jax.random.normal(k_x, (n_nodes, in_feats), jnp.float32)

    out = model(a_norm, x)
    jax.block_until_ready(out)

    assert out.shape == (n_nodes, out_feats)
    # rows of log_softmax must exponentiate-sum to 1
    assert jnp.allclose(jnp.sum(jnp.exp(out), axis=-1), 1.0, atol=1e-3)
    print("KERNEL_OK")
</pallas_src>

<mosaic_0001>
module attributes {stable_mosaic.version = 11 : i64} {
  func.func @_hubgnn_fused_kernel(%arg0: memref<8x8xbf16, #tpu.memory_space<vmem>>, %arg1: memref<8x16xf32, #tpu.memory_space<vmem>>, %arg2: memref<16x256xf32, #tpu.memory_space<vmem>>, %arg3: memref<32x128xbf16, #tpu.memory_space<vmem>>, %arg4: memref<128x768xbf16, #tpu.memory_space<vmem>>, %arg5: memref<256x384xbf16, #tpu.memory_space<vmem>>, %arg6: memref<8x128xf32, #tpu.memory_space<vmem>>) attributes {dimension_semantics = [], scalar_prefetch = 0 : i64, scratch_operands = 0 : i64, tpu.core_type = #tpu.core_type<tc>} {
    %c0 = arith.constant 0 : index
    %c0_0 = arith.constant 0 : index
    %0 = vector.load %arg0[%c0, %c0_0] : memref<8x8xbf16, #tpu.memory_space<vmem>>, vector<8x8xbf16>
    %c0_1 = arith.constant 0 : index
    %c0_2 = arith.constant 0 : index
    %1 = vector.load %arg1[%c0_1, %c0_2] : memref<8x16xf32, #tpu.memory_space<vmem>>, vector<8x16xf32>
    %2 = arith.truncf %1 : vector<8x16xf32> to vector<8x16xbf16>
    %cst = arith.constant dense<0.000000e+00> : vector<8x16xf32>
    %3 = tpu.matmul %0, %2, %cst {dimension_numbers = #tpu.dot_dimension_numbers<[1], [0], [0], [1], [0, 0, 1, 1], [], []>} : vector<8x8xbf16>, vector<8x16xbf16>, vector<8x16xf32> -> vector<8x16xf32>
    %4 = arith.truncf %3 : vector<8x16xf32> to vector<8x16xbf16>
    %c0_3 = arith.constant 0 : index
    %c0_4 = arith.constant 0 : index
    %5 = vector.load %arg3[%c0_3, %c0_4] : memref<32x128xbf16, #tpu.memory_space<vmem>>, vector<16x128xbf16>
    %cst_5 = arith.constant dense<0.000000e+00> : vector<8x128xf32>
    %6 = tpu.matmul %2, %5, %cst_5 {dimension_numbers = #tpu.dot_dimension_numbers<[1], [0], [0], [1], [0, 0, 1, 1], [], []>} : vector<8x16xbf16>, vector<16x128xbf16>, vector<8x128xf32> -> vector<8x128xf32>
    %c16 = arith.constant 16 : index
    %c0_6 = arith.constant 0 : index
    %7 = vector.load %arg3[%c16, %c0_6] : memref<32x128xbf16, #tpu.memory_space<vmem>>, vector<16x128xbf16>
    %cst_7 = arith.constant dense<0.000000e+00> : vector<8x128xf32>
    %8 = tpu.matmul %4, %7, %cst_7 {dimension_numbers = #tpu.dot_dimension_numbers<[1], [0], [0], [1], [0, 0, 1, 1], [], []>} : vector<8x16xbf16>, vector<16x128xbf16>, vector<8x128xf32> -> vector<8x128xf32>
    %9 = arith.addf %6, %8 : vector<8x128xf32>
    %c0_8 = arith.constant 0 : index
    %c0_9 = arith.constant 0 : index
    %10 = vector.load %arg2[%c0_8, %c0_9] : memref<16x256xf32, #tpu.memory_space<vmem>>, vector<1x128xf32>
    %11 = vector.broadcast %10 : vector<1x128xf32> to vector<8x128xf32>
    %12 = arith.addf %9, %11 : vector<8x128xf32>
    %cst_10 = arith.constant 0.000000e+00 : f32
    %13 = vector.broadcast %cst_10 : f32 to vector<8x128xf32>
    %14 = arith.maximumf %12, %13 : vector<8x128xf32>
    %15 = arith.truncf %14 : vector<8x128xf32> to vector<8x128xbf16>
    %c0_11 = arith.constant 0 : index
    %c0_12 = arith.constant 0 : index
    %16 = vector.load %arg4[%c0_11, %c0_12] : memref<128x768xbf16, #tpu.memory_space<vmem>>, vector<128x384xbf16>
    %cst_13 = arith.constant dense<0.000000e+00> : vector<8x384xf32>
    %17 = tpu.matmul %15, %16, %cst_13 {dimension_numbers = #tpu.dot_dimension_numbers<[1], [0], [0], [1], [0, 0, 1, 1], [], []>} : vector<8x128xbf16>, vector<128x384xbf16>, vector<8x384xf32> -> vector<8x384xf32>
    %18 = vector.extract_strided_slice %17 {offsets = [0, 0], sizes = [8, 128], strides = [1, 1]} : vector<8x384xf32> to vector<8x128xf32>
    %c1 = arith.constant 1 : index
    %c0_14 = arith.constant 0 : index
    %19 = vector.load %arg2[%c1, %c0_14] : memref<16x256xf32, #tpu.memory_space<vmem>>, vector<1x128xf32>
    %20 = vector.broadcast %19 : vector<1x128xf32> to vector<8x128xf32>
    %21 = arith.addf %18, %20 : vector<8x128xf32>
    %22 = arith.truncf %21 : vector<8x128xf32> to vector<8x128xbf16>
    %23 = vector.extract_strided_slice %17 {offsets = [0, 128], sizes = [8, 128], strides = [1, 1]} : vector<8x384xf32> to vector<8x128xf32>
    %c2 = arith.constant 2 : index
    %c0_15 = arith.constant 0 : index
    %24 = vector.load %arg2[%c2, %c0_15] : memref<16x256xf32, #tpu.memory_space<vmem>>, vector<1x128xf32>
    %25 = vector.broadcast %24 : vector<1x128xf32> to vector<8x128xf32>
    %26 = arith.addf %23, %25 : vector<8x128xf32>
    %27 = arith.truncf %26 : vector<8x128xf32> to vector<8x128xbf16>
    %28 = vector.extract_strided_slice %17 {offsets = [0, 256], sizes = [8, 128], strides = [1, 1]} : vector<8x384xf32> to vector<8x128xf32>
    %c3 = arith.constant 3 : index
    %c0_16 = arith.constant 0 : index
    %29 = vector.load %arg2[%c3, %c0_16] : memref<16x256xf32, #tpu.memory_space<vmem>>, vector<1x128xf32>
    %30 = vector.broadcast %29 : vector<1x128xf32> to vector<8x128xf32>
    %31 = arith.addf %28, %30 : vector<8x128xf32>
    %32 = arith.truncf %31 : vector<8x128xf32> to vector<8x128xbf16>
    %cst_17 = arith.constant dense<0.000000e+00> : vector<8x8xf32>
    %33 = tpu.matmul %22, %27, %cst_17 {dimension_numbers = #tpu.dot_dimension_numbers<[1], [1], [0], [0], [0, 0, 1, 0], [], []>} : vector<8x128xbf16>, vector<8x128xbf16>, vector<8x8xf32> -> vector<8x8xf32>
    %cst_18 = arith.constant dense<0xFF800000> : vector<8xf32>
    %34 = vector.multi_reduction <maximumf>, %33, %cst_18 [1] : vector<8x8xf32> to vector<8xf32>
    %35 = vector.shape_cast %34 : vector<8xf32> to vector<8x1xf32>
    %36 = vector.broadcast %35 : vector<8x1xf32> to vector<8x8xf32>
    %37 = arith.subf %33, %36 : vector<8x8xf32>
    %38 = math.exp %37 : vector<8x8xf32>
    %cst_19 = arith.constant dense<0.000000e+00> : vector<8xf32>
    %39 = vector.multi_reduction <add>, %38, %cst_19 [1] : vector<8x8xf32> to vector<8xf32>
    %40 = vector.shape_cast %39 : vector<8xf32> to vector<8x1xf32>
    %41 = tpu.reciprocal %40 {approx = true} : vector<8x1xf32> -> vector<8x1xf32>
    %42 = vector.broadcast %41 : vector<8x1xf32> to vector<8x8xf32>
    %43 = arith.mulf %38, %42 : vector<8x8xf32>
    %44 = arith.truncf %43 : vector<8x8xf32> to vector<8x8xbf16>
    %cst_20 = arith.constant dense<0.000000e+00> : vector<8x128xf32>
    %45 = tpu.matmul %44, %32, %cst_20 {dimension_numbers = #tpu.dot_dimension_numbers<[1], [0], [0], [1], [0, 0, 1, 1], [], []>} : vector<8x8xbf16>, vector<8x128xbf16>, vector<8x128xf32> -> vector<8x128xf32>
    %46 = arith.truncf %45 : vector<8x128xf32> to vector<8x128xbf16>
    %c0_21 = arith.constant 0 : index
    %c384 = arith.constant 384 : index
    %47 = vector.load %arg4[%c0_21, %c384] : memref<128x768xbf16, #tpu.memory_space<vmem>>, vector<128x128xbf16>
    %cst_22 = arith.constant dense<0.000000e+00> : vector<8x128xf32>
    %48 = tpu.matmul %46, %47, %cst_22 {dimension_numbers = #tpu.dot_dimension_numbers<[1], [0], [0], [1], [0, 0, 1, 1], [], []>} : vector<8x128xbf16>, vector<128x128xbf16>, vector<8x128xf32> -> vector<8x128xf32>
    %c4 = arith.constant 4 : index
    %c0_23 = arith.constant 0 : index
    %49 = vector.load %arg2[%c4, %c0_23] : memref<16x256xf32, #tpu.memory_space<vmem>>, vector<1x128xf32>
    %50 = vector.broadcast %49 : vector<1x128xf32> to vector<8x128xf32>
    %51 = arith.addf %48, %50 : vector<8x128xf32>
    %52 = arith.addf %14, %51 : vector<8x128xf32>
    %cst_24 = arith.constant dense<0.000000e+00> : vector<8xf32>
    %53 = vector.multi_reduction <add>, %52, %cst_24 [1] : vector<8x128xf32> to vector<8xf32>
    %54 = vector.shape_cast %53 : vector<8xf32> to vector<8x1xf32>
    %cst_25 = arith.constant 1.280000e+02 : f32
    %55 = vector.broadcast %cst_25 : f32 to vector<8x1xf32>
    %56 = arith.divf %54, %55 : vector<8x1xf32>
    %57 = vector.broadcast %56 : vector<8x1xf32> to vector<8x128xf32>
    %58 = arith.subf %52, %57 : vector<8x128xf32>
    %59 = arith.mulf %58, %58 : vector<8x128xf32>
    %cst_26 = arith.constant dense<0.000000e+00> : vector<8xf32>
    %60 = vector.multi_reduction <add>, %59, %cst_26 [1] : vector<8x128xf32> to vector<8xf32>
    %61 = vector.shape_cast %60 : vector<8xf32> to vector<8x1xf32>
    %cst_27 = arith.constant 1.280000e+02 : f32
    %62 = vector.broadcast %cst_27 : f32 to vector<8x1xf32>
    %63 = arith.divf %61, %62 : vector<8x1xf32>
    %64 = vector.broadcast %56 : vector<8x1xf32> to vector<8x128xf32>
    %65 = arith.subf %52, %64 : vector<8x128xf32>
    %cst_28 = arith.constant 9.99999974E-6 : f32
    %66 = vector.broadcast %cst_28 : f32 to vector<8x1xf32>
    %67 = arith.addf %63, %66 : vector<8x1xf32>
    %68 = math.rsqrt %67 : vector<8x1xf32>
    %69 = vector.broadcast %68 : vector<8x1xf32> to vector<8x128xf32>
    %70 = arith.mulf %65, %69 : vector<8x128xf32>
    %c5 = arith.constant 5 : index
    %c0_29 = arith.constant 0 : index
    %71 = vector.load %arg2[%c5, %c0_29] : memref<16x256xf32, #tpu.memory_space<vmem>>, vector<1x128xf32>
    %72 = vector.broadcast %71 : vector<1x128xf32> to vector<8x128xf32>
    %73 = arith.mulf %70, %72 : vector<8x128xf32>
    %c6 = arith.constant 6 : index
    %c0_30 = arith.constant 0 : index
    %74 = vector.load %arg2[%c6, %c0_30] : memref<16x256xf32, #tpu.memory_space<vmem>>, vector<1x128xf32>
    %75 = vector.broadcast %74 : vector<1x128xf32> to vector<8x128xf32>
    %76 = arith.addf %73, %75 : vector<8x128xf32>
    %77 = arith.truncf %76 : vector<8x128xf32> to vector<8x128xbf16>
    %c0_31 = arith.constant 0 : index
    %c512 = arith.constant 512 : index
    %78 = vector.load %arg4[%c0_31, %c512] : memref<128x768xbf16, #tpu.memory_space<vmem>>, vector<128x256xbf16>
    %cst_32 = arith.constant dense<0.000000e+00> : vector<8x256xf32>
    %79 = tpu.matmul %77, %78, %cst_32 {dimension_numbers = #tpu.dot_dimension_numbers<[1], [0], [0], [1], [0, 0, 1, 1], [], []>} : vector<8x128xbf16>, vector<128x256xbf16>, vector<8x256xf32> -> vector<8x256xf32>
    %c7 = arith.constant 7 : index
    %c0_33 = arith.constant 0 : index
    %80 = vector.load %arg2[%c7, %c0_33] : memref<16x256xf32, #tpu.memory_space<vmem>>, vector<1x256xf32>
    %81 = vector.broadcast %80 : vector<1x256xf32> to vector<8x256xf32>
    %82 = arith.addf %79, %81 : vector<8x256xf32>
    %cst_34 = arith.constant 0.000000e+00 : f32
    %83 = vector.broadcast %cst_34 : f32 to vector<8x256xf32>
    %84 = arith.maximumf %82, %83 : vector<8x256xf32>
    %85 = arith.truncf %84 : vector<8x256xf32> to vector<8x256xbf16>
    %c0_35 = arith.constant 0 : index
    %c0_36 = arith.constant 0 : index
    %86 = vector.load %arg5[%c0_35, %c0_36] : memref<256x384xbf16, #tpu.memory_space<vmem>>, vector<256x128xbf16>
    %cst_37 = arith.constant dense<0.000000e+00> : vector<8x128xf32>
    %87 = tpu.matmul %85, %86, %cst_37 {dimension_numbers = #tpu.dot_dimension_numbers<[1], [0], [0], [1], [0, 0, 1, 1], [], []>} : vector<8x256xbf16>, vector<256x128xbf16>, vector<8x128xf32> -> vector<8x128xf32>
    %c8 = arith.constant 8 : index
    %c0_38 = arith.constant 0 : index
    %88 = vector.load %arg2[%c8, %c0_38] : memref<16x256xf32, #tpu.memory_space<vmem>>, vector<1x128xf32>
    %89 = vector.broadcast %88 : vector<1x128xf32> to vector<8x128xf32>
    %90 = arith.addf %87, %89 : vector<8x128xf32>
    %91 = arith.addf %76, %90 : vector<8x128xf32>
    %cst_39 = arith.constant dense<0.000000e+00> : vector<8xf32>
    %92 = vector.multi_reduction <add>, %91, %cst_39 [1] : vector<8x128xf32> to vector<8xf32>
    %93 = vector.shape_cast %92 : vector<8xf32> to vector<8x1xf32>
    %cst_40 = arith.constant 1.280000e+02 : f32
    %94 = vector.broadcast %cst_40 : f32 to vector<8x1xf32>
    %95 = arith.divf %93, %94 : vector<8x1xf32>
    %96 = vector.broadcast %95 : vector<8x1xf32> to vector<8x128xf32>
    %97 = arith.subf %91, %96 : vector<8x128xf32>
    %98 = arith.mulf %97, %97 : vector<8x128xf32>
    %cst_41 = arith.constant dense<0.000000e+00> : vector<8xf32>
    %99 = vector.multi_reduction <add>, %98, %cst_41 [1] : vector<8x128xf32> to vector<8xf32>
    %100 = vector.shape_cast %99 : vector<8xf32> to vector<8x1xf32>
    %cst_42 = arith.constant 1.280000e+02 : f32
    %101 = vector.broadcast %cst_42 : f32 to vector<8x1xf32>
    %102 = arith.divf %100, %101 : vector<8x1xf32>
    %103 = vector.broadcast %95 : vector<8x1xf32> to vector<8x128xf32>
    %104 = arith.subf %91, %103 : vector<8x128xf32>
    %cst_43 = arith.constant 9.99999974E-6 : f32
    %105 = vector.broadcast %cst_43 : f32 to vector<8x1xf32>
    %106 = arith.addf %102, %105 : vector<8x1xf32>
    %107 = math.rsqrt %106 : vector<8x1xf32>
    %108 = vector.broadcast %107 : vector<8x1xf32> to vector<8x128xf32>
    %109 = arith.mulf %104, %108 : vector<8x128xf32>
    %c9 = arith.constant 9 : index
    %c0_44 = arith.constant 0 : index
    %110 = vector.load %arg2[%c9, %c0_44] : memref<16x256xf32, #tpu.memory_space<vmem>>, vector<1x128xf32>
    %111 = vector.broadcast %110 : vector<1x128xf32> to vector<8x128xf32>
    %112 = arith.mulf %109, %111 : vector<8x128xf32>
    %c10 = arith.constant 10 : index
    %c0_45 = arith.constant 0 : index
    %113 = vector.load %arg2[%c10, %c0_45] : memref<16x256xf32, #tpu.memory_space<vmem>>, vector<1x128xf32>
    %114 = vector.broadcast %113 : vector<1x128xf32> to vector<8x128xf32>
    %115 = arith.addf %112, %114 : vector<8x128xf32>
    %cst_46 = arith.constant dense<0.000000e+00> : vector<8xf32>
    %116 = vector.multi_reduction <add>, %14, %cst_46 [1] : vector<8x128xf32> to vector<8xf32>
    %117 = vector.shape_cast %116 : vector<8xf32> to vector<8x1xf32>
    %cst_47 = arith.constant 1.280000e+02 : f32
    %118 = vector.broadcast %cst_47 : f32 to vector<8x1xf32>
    %119 = arith.divf %117, %118 : vector<8x1xf32>
    %120 = vector.broadcast %119 : vector<8x1xf32> to vector<8x128xf32>
    %121 = arith.subf %14, %120 : vector<8x128xf32>
    %122 = arith.mulf %121, %121 : vector<8x128xf32>
    %cst_48 = arith.constant dense<0.000000e+00> : vector<8xf32>
    %123 = vector.multi_reduction <add>, %122, %cst_48 [1] : vector<8x128xf32> to vector<8xf32>
    %124 = vector.shape_cast %123 : vector<8xf32> to vector<8x1xf32>
    %cst_49 = arith.constant 1.280000e+02 : f32
    %125 = vector.broadcast %cst_49 : f32 to vector<8x1xf32>
    %126 = arith.divf %124, %125 : vector<8x1xf32>
    %127 = vector.broadcast %119 : vector<8x1xf32> to vector<8x128xf32>
    %128 = arith.subf %14, %127 : vector<8x128xf32>
    %cst_50 = arith.constant 9.99999974E-6 : f32
    %129 = vector.broadcast %cst_50 : f32 to vector<8x1xf32>
    %130 = arith.addf %126, %129 : vector<8x1xf32>
    %131 = math.rsqrt %130 : vector<8x1xf32>
    %132 = vector.broadcast %131 : vector<8x1xf32> to vector<8x128xf32>
    %133 = arith.mulf %128, %132 : vector<8x128xf32>
    %c11 = arith.constant 11 : index
    %c0_51 = arith.constant 0 : index
    %134 = vector.load %arg2[%c11, %c0_51] : memref<16x256xf32, #tpu.memory_space<vmem>>, vector<1x128xf32>
    %135 = vector.broadcast %134 : vector<1x128xf32> to vector<8x128xf32>
    %136 = arith.mulf %133, %135 : vector<8x128xf32>
    %c12 = arith.constant 12 : index
    %c0_52 = arith.constant 0 : index
    %137 = vector.load %arg2[%c12, %c0_52] : memref<16x256xf32, #tpu.memory_space<vmem>>, vector<1x128xf32>
    %138 = vector.broadcast %137 : vector<1x128xf32> to vector<8x128xf32>
    %139 = arith.addf %136, %138 : vector<8x128xf32>
    %140 = arith.truncf %139 : vector<8x128xf32> to vector<8x128xbf16>
    %141 = arith.truncf %115 : vector<8x128xf32> to vector<8x128xbf16>
    %142 = tpu.concatenate %140, %141 in 1 : vector<8x128xbf16>, vector<8x128xbf16> -> vector<8x256xbf16>
    %c0_53 = arith.constant 0 : index
    %c128 = arith.constant 128 : index
    %143 = vector.load %arg5[%c0_53, %c128] : memref<256x384xbf16, #tpu.memory_space<vmem>>, vector<256x256xbf16>
    %cst_54 = arith.constant dense<0.000000e+00> : vector<8x256xf32>
    %144 = tpu.matmul %142, %143, %cst_54 {dimension_numbers = #tpu.dot_dimension_numbers<[1], [0], [0], [1], [0, 0, 1, 1], [], []>} : vector<8x256xbf16>, vector<256x256xbf16>, vector<8x256xf32> -> vector<8x256xf32>
    %145 = vector.extract_strided_slice %144 {offsets = [0, 128], sizes = [8, 128], strides = [1, 1]} : vector<8x256xf32> to vector<8x128xf32>
    %146 = arith.truncf %145 : vector<8x128xf32> to vector<8x128xbf16>
    %cst_55 = arith.constant dense<0.000000e+00> : vector<8x128xf32>
    %147 = tpu.matmul %0, %146, %cst_55 {dimension_numbers = #tpu.dot_dimension_numbers<[1], [0], [0], [1], [0, 0, 1, 1], [], []>} : vector<8x8xbf16>, vector<8x128xbf16>, vector<8x128xf32> -> vector<8x128xf32>
    %148 = vector.extract_strided_slice %144 {offsets = [0, 0], sizes = [8, 128], strides = [1, 1]} : vector<8x256xf32> to vector<8x128xf32>
    %149 = arith.addf %148, %147 : vector<8x128xf32>
    %c13 = arith.constant 13 : index
    %c0_56 = arith.constant 0 : index
    %150 = vector.load %arg2[%c13, %c0_56] : memref<16x256xf32, #tpu.memory_space<vmem>>, vector<1x128xf32>
    %151 = vector.broadcast %150 : vector<1x128xf32> to vector<8x128xf32>
    %152 = arith.addf %149, %151 : vector<8x128xf32>
    %153 = tpu.iota {dimensions = array<i32: 1>} : vector<8x128xi32>
    %c8_i32 = arith.constant 8 : i32
    %154 = vector.broadcast %c8_i32 : i32 to vector<8x128xi32>
    %155 = arith.cmpi slt, %153, %154 : vector<8x128xi32>
    %cst_57 = arith.constant 0xFF800000 : f32
    %156 = vector.broadcast %cst_57 : f32 to vector<8x128xf32>
    %157 = arith.select %155, %152, %156 : vector<8x128xi1>, vector<8x128xf32>
    %cst_58 = arith.constant dense<0xFF800000> : vector<8xf32>
    %158 = vector.multi_reduction <maximumf>, %157, %cst_58 [1] : vector<8x128xf32> to vector<8xf32>
    %159 = vector.shape_cast %158 : vector<8xf32> to vector<8x1xf32>
    %160 = vector.broadcast %159 : vector<8x1xf32> to vector<8x128xf32>
    %161 = arith.subf %157, %160 : vector<8x128xf32>
    %162 = math.exp %161 : vector<8x128xf32>
    %cst_59 = arith.constant dense<0.000000e+00> : vector<8xf32>
    %163 = vector.multi_reduction <add>, %162, %cst_59 [1] : vector<8x128xf32> to vector<8xf32>
    %164 = vector.shape_cast %163 : vector<8xf32> to vector<8x1xf32>
    %165 = math.log %164 : vector<8x1xf32>
    %166 = vector.broadcast %159 : vector<8x1xf32> to vector<8x128xf32>
    %167 = arith.subf %157, %166 : vector<8x128xf32>
    %168 = vector.broadcast %165 : vector<8x1xf32> to vector<8x128xf32>
    %169 = arith.subf %167, %168 : vector<8x128xf32>
    %c0_60 = arith.constant 0 : index
    %c0_61 = arith.constant 0 : index
    %170 = vector.load %arg6[%c0_60, %c0_61] : memref<8x128xf32, #tpu.memory_space<vmem>>, vector<8x128xf32>
    tpu.vector_store %arg6[%c0_60, %c0_61], %169 {strides = array<i32>} : memref<8x128xf32, #tpu.memory_space<vmem>>, vector<8x128xf32>,
    return
  }
}

</mosaic_0001>

<llo_original>
// kernel: tpu_custom_call.1
$region0: #{tpu_custom_call.1}
  #allocation0 [shape = 'u32[]', space=smem, size = 0x4, offset = 0x4, fixed_abs, tag = 'smem constant byte address 0x4 - core index']
  #allocation1 [shape = 'u32[144,128]{1,0:T(1,128)}', space=vmem, size = 0x12000, scoped, tag = 'internal scratch']
  %s0 = inlined_call_operand.hbm [shape: bf16[8,8], index: 0, kind: input, shape index: {}]
  %s1 = inlined_call_operand.hbm [shape: f32[8,16], index: 1, kind: input, shape index: {}]
  %s2 = inlined_call_operand.hbm [shape: f32[16,256], index: 2, kind: input, shape index: {}]
  %s3 = inlined_call_operand.hbm [shape: bf16[32,128], index: 3, kind: input, shape index: {}]
  %s4 = inlined_call_operand.hbm [shape: bf16[128,768], index: 4, kind: input, shape index: {}]
  %s5 = inlined_call_operand.hbm [shape: bf16[256,384], index: 5, kind: input, shape index: {}]
  %s6 = inlined_call_operand.hbm [shape: f32[8,128], index: 6, kind: output, shape index: {}]
  %s7 = sld [smem:[#allocation0]]
  $region58: #{tpu_custom_call.1} parent=0
    _
  %s9 = ssub.s32 1, %s7
  %s10 = scalar_select 0, %s9, %s7
  $region1: #{tpu_custom_call.1} parent=0
    #allocation2 [shape = 'u8[2048]{0}', space=vmem, size = 0x800, scoped, tag = 'input window, operand 0, single buffered']
    #allocation3 [shape = 's32[1]{0}', space=sflag, size = 0x4, scoped, tag = 'scoped memory for tpu_custom_call.1']
    #allocation4 [shape = 's32[1]{0}', space=sflag, size = 0x4, scoped, tag = 'scoped memory for tpu_custom_call.1']
    #allocation5 [shape = 'u8[4096]{0}', space=vmem, size = 0x1000, scoped, tag = 'input window, operand 1, single buffered']
    #allocation6 [shape = 's32[1]{0}', space=sflag, size = 0x4, scoped, tag = 'scoped memory for tpu_custom_call.1']
    #allocation7 [shape = 'u8[16384]{0}', space=vmem, size = 0x4000, scoped, tag = 'input window, operand 2, single buffered']
    #allocation8 [shape = 'u8[8192]{0}', space=vmem, size = 0x2000, scoped, tag = 'input window, operand 3, single buffered']
    #allocation9 [shape = 's32[1]{0}', space=sflag, size = 0x4, scoped, tag = 'scoped memory for tpu_custom_call.1']
    #allocation10 [shape = 'u8[196608]{0}', space=vmem, size = 0x30000, scoped, tag = 'input window, operand 4, single buffered']
    #allocation11 [shape = 'u8[196608]{0}', space=vmem, size = 0x30000, scoped, tag = 'input window, operand 5, single buffered']
    #allocation12 [shape = 's32[1]{0}', space=sflag, size = 0x4, scoped, tag = 'scoped memory for tpu_custom_call.1']
    #allocation13 [shape = 'u8[4096]{0}', space=vmem, size = 0x1000, scoped, tag = 'output window, operand 0, single buffered']
    %11 = vsyncpa [#allocation3], 0
    %12 = vsyncpa [#allocation6], 0
    %13 = vsyncpa [#allocation9], 0
    %14 = vsyncpa [#allocation12], 0
    %15 = vsyncpa [#allocation4], 0
    // Predicated region
    $region2: #{tpu_custom_call.1} parent=1 // pred_check
      _
    $region3: #{tpu_custom_call.1} parent=1 // pred_check_branch
      %17 = sbr.rel (0) target = $region5
    $region4: #{tpu_custom_call.1} parent=1 // pred_region
      %s19 = ssub.s32 64, 64
      %20 = vsyncadd [#allocation3], %s19
      %s22 = sshll.u32 [#allocation2], 4
      %s23 = int_to_ptr.vmem [resolvable:$true] %s22
      %25 = dma.hbm_to_vmem [thread:$0]  %s0, 64, %s23, [#allocation3]
    $region5: #{tpu_custom_call.1} parent=1 // pred_fallthru
      _
    // Predicated region
    $region6: #{tpu_custom_call.1} parent=1 // pred_check
      _
    $region7: #{tpu_custom_call.1} parent=1 // pred_check_branch
      %27 = sbr.rel (0) target = $region9
    $region8: #{tpu_custom_call.1} parent=1 // pred_region
      %s29 = ssub.s32 128, 128
      %30 = vsyncadd [#allocation6], %s29
      %s32 = sshll.u32 [#allocation5], 4
      %s33 = int_to_ptr.vmem [resolvable:$true] %s32
      %35 = dma.hbm_to_vmem [thread:$0]  %s1, 128, %s33, [#allocation6]
    $region9: #{tpu_custom_call.1} parent=1 // pred_fallthru
      _
    // Predicated region
    $region10: #{tpu_custom_call.1} parent=1 // pred_check
      _
    $region11: #{tpu_custom_call.1} parent=1 // pred_check_branch
      %37 = sbr.rel (0) target = $region13
    $region12: #{tpu_custom_call.1} parent=1 // pred_region
      %s39 = ssub.s32 512, 512
      %40 = vsyncadd [#allocation6], %s39
      %s41 = sshll.u32 [#allocation7], 4
      %s42 = int_to_ptr.vmem [resolvable:$true] %s41
      %47 = dma.hbm_to_vmem [thread:$0]  %s2, 512, %s42, [#allocation6], 256, 256, 16
    $region13: #{tpu_custom_call.1} parent=1 // pred_fallthru
      _
    // Predicated region
    $region14: #{tpu_custom_call.1} parent=1 // pred_check
      _
    $region15: #{tpu_custom_call.1} parent=1 // pred_check_branch
      %49 = sbr.rel (0) target = $region17
    $region16: #{tpu_custom_call.1} parent=1 // pred_region
      %s51 = ssub.s32 256, 256
      %52 = vsyncadd [#allocation9], %s51
      %s53 = sshll.u32 [#allocation8], 4
      %s54 = int_to_ptr.vmem [resolvable:$true] %s53
      %59 = dma.hbm_to_vmem [thread:$0]  %s3, 256, %s54, [#allocation9], 64, 64, 4
    $region17: #{tpu_custom_call.1} parent=1 // pred_fallthru
      _
    // Predicated region
    $region18: #{tpu_custom_call.1} parent=1 // pred_check
      _
    $region19: #{tpu_custom_call.1} parent=1 // pred_check_branch
      %61 = sbr.rel (0) target = $region21
    $region20: #{tpu_custom_call.1} parent=1 // pred_region
      %s63 = ssub.s32 6144, 6144
      %64 = vsyncadd [#allocation9], %s63
      %s65 = sshll.u32 [#allocation10], 4
      %s66 = int_to_ptr.vmem [resolvable:$true] %s65
      %71 = dma.hbm_to_vmem [thread:$0]  %s4, 6144, %s66, [#allocation9], 384, 384, 24
    $region21: #{tpu_custom_call.1} parent=1 // pred_fallthru
      _
    // Predicated region
    $region22: #{tpu_custom_call.1} parent=1 // pred_check
      _
    $region23: #{tpu_custom_call.1} parent=1 // pred_check_branch
      %73 = sbr.rel (0) target = $region25
    $region24: #{tpu_custom_call.1} parent=1 // pred_region
      %s75 = ssub.s32 6144, 6144
      %76 = vsyncadd [#allocation12], %s75
      %s77 = sshll.u32 [#allocation11], 4
      %s78 = int_to_ptr.vmem [resolvable:$true] %s77
      %83 = dma.hbm_to_vmem [thread:$0]  %s5, 6144, %s78, [#allocation12], 192, 192, 12
    $region25: #{tpu_custom_call.1} parent=1 // pred_fallthru
      _
    // Predicated region
    $region26: #{tpu_custom_call.1} parent=1 // pred_check
      _
    $region27: #{tpu_custom_call.1} parent=1 // pred_check_branch
      %85 = sbr.rel (0) target = $region29
    $region28: #{tpu_custom_call.1} parent=1 // pred_region
      %86 = dma.done [#allocation3], 64
    $region29: #{tpu_custom_call.1} parent=1 // pred_fallthru
      _
    // Predicated region
    $region30: #{tpu_custom_call.1} parent=1 // pred_check
      _
    $region31: #{tpu_custom_call.1} parent=1 // pred_check_branch
      %88 = sbr.rel (0) target = $region33
    $region32: #{tpu_custom_call.1} parent=1 // pred_region
      %89 = dma.done [#allocation6], 128
    $region33: #{tpu_custom_call.1} parent=1 // pred_fallthru
      _
    // Predicated region
    $region34: #{tpu_custom_call.1} parent=1 // pred_check
      _
    $region35: #{tpu_custom_call.1} parent=1 // pred_check_branch
      %91 = sbr.rel (0) target = $region37
    $region36: #{tpu_custom_call.1} parent=1 // pred_region
      %92 = dma.done [#allocation6], 512
    $region37: #{tpu_custom_call.1} parent=1 // pred_fallthru
      _
    // Predicated region
    $region38: #{tpu_custom_call.1} parent=1 // pred_check
      _
    $region39: #{tpu_custom_call.1} parent=1 // pred_check_branch
      %94 = sbr.rel (0) target = $region41
    $region40: #{tpu_custom_call.1} parent=1 // pred_region
      %95 = dma.done [#allocation9], 256
    $region41: #{tpu_custom_call.1} parent=1 // pred_fallthru
      _
    // Predicated region
    $region42: #{tpu_custom_call.1} parent=1 // pred_check
      _
    $region43: #{tpu_custom_call.1} parent=1 // pred_check_branch
      %97 = sbr.rel (0) target = $region45
    $region44: #{tpu_custom_call.1} parent=1 // pred_region
      %98 = dma.done [#allocation9], 6144
    $region45: #{tpu_custom_call.1} parent=1 // pred_fallthru
      _
    // Predicated region
    $region46: #{tpu_custom_call.1} parent=1 // pred_check
      _
    $region47: #{tpu_custom_call.1} parent=1 // pred_check_branch
      %100 = sbr.rel (0) target = $region49
    $region48: #{tpu_custom_call.1} parent=1 // pred_region
      %101 = dma.done [#allocation12], 6144
    $region49: #{tpu_custom_call.1} parent=1 // pred_fallthru
      _
    %v103 = vld [vmem:[#allocation2] sm:$0xf]
    %v104 = vld [vmem:[#allocation5] sm:$0xff]
    %v105 = vpack.c.bf16 %v104, %v104
    %vm106 = vcmask 64512
    %v108 = vsel %vm106, %v103, 0
    %vm110 = vcmask 1043456
    %v112 = vsel %vm110, %v105, 0
    %114 = vmatprep.subr.bf16.mxu0 0
    %115 = vmatpush1.bf16.msra.mxu0 %v112
    %116 = vmatprep.subr.bf16.mxu0 0
    %117 = vmatpush1.bf16.msra.mxu0 0
    %118 = vmatprep.subr.bf16.mxu0 0
    %119 = vmatpush1.bf16.msra.mxu0 0
    %120 = vmatprep.subr.bf16.mxu0 0
    %121 = vmatpush1.bf16.msra.mxu0 0
    %122 = vmatprep.subr.bf16.mxu0 0
    %123 = vmatpush1.bf16.msra.mxu0 0
    %124 = vmatprep.subr.bf16.mxu0 0
    %125 = vmatpush1.bf16.msra.mxu0 0
    %126 = vmatprep.subr.bf16.mxu0 0
    %127 = vmatpush1.bf16.msra.mxu0 0
    %128 = vmatprep.subr.bf16.mxu0 0
    %129 = vmatpush1.bf16.msra.mxu0 0
    %130 = vmatprep.subr.bf16.mxu0 0
    %131 = vmatpush1.bf16.msra.mxu0 0
    %132 = vmatprep.subr.bf16.mxu0 0
    %133 = vmatpush1.bf16.msra.mxu0 0
    %134 = vmatprep.subr.bf16.mxu0 0
    %135 = vmatpush1.bf16.msra.mxu0 0
    %136 = vmatprep.subr.bf16.mxu0 0
    %137 = vmatpush1.bf16.msra.mxu0 0
    %138 = vmatprep.subr.bf16.mxu0 0
    %139 = vmatpush1.bf16.msra.mxu0 0
    %140 = vmatprep.subr.bf16.mxu0 0
    %141 = vmatpush1.bf16.msra.mxu0 0
    %142 = vmatprep.subr.bf16.mxu0 0
    %143 = vmatpush1.bf16.msra.mxu0 0
    %144 = vmatprep.subr.bf16.mxu0 0
    %145 = vmatpush1.bf16.msra.mxu0 0
    %146 = vmatprep.mubr.bf16.mxu0 0
    %147 = vmatmul.mubr.bf16.gmra.mrb[0].mxu0 %v108
    %v148 = vpop.f32.mrb[0].mxu0
    %v149 = vadd.f32 0.0, %v148
    %v150 = vpop.f32.mrb[0].mxu0
    %v151 = vpop.f32.mrb[0].mxu0
    %v152 = vpop.f32.mrb[0].mxu0
    %153 = vdwg.mxu0
    %v154 = vpack.c.bf16 %v149, %v149
    %v155 = vld [vmem:[#allocation8] sm:$0xf]
    %v156 = vld [vmem:[#allocation8 + $0x4] sm:$0xf]
    %v157 = vld [vmem:[#allocation8 + $0x8] sm:$0xf]
    %v158 = vld [vmem:[#allocation8 + $0xc] sm:$0xf]
    %v161 = vunpack.c.l.b16 %v157
    %v162 = vunpack.c.l.b16 %v158
    %v163 = vpack.c.b16 %v162, %v161
    %vm165 = vcmask 130048
    %v167 = vsel %vm165, %v154, 0
    %169 = vmatprep.subr.bf16.mxu0 0
    %170 = vmatpush1.bf16.msra.mxu0 %v163
    %171 = vmatprep.subr.bf16.mxu0 0
    %172 = vmatpush1.bf16.msra.mxu0 0
    %173 = vmatprep.subr.bf16.mxu0 0
    %174 = vmatpush1.bf16.msra.mxu0 0
    %175 = vmatprep.subr.bf16.mxu0 0
    %176 = vmatpush1.bf16.msra.mxu0 0
    %177 = vmatprep.subr.bf16.mxu0 0
    %178 = vmatpush1.bf16.msra.mxu0 0
    %179 = vmatprep.subr.bf16.mxu0 0
    %180 = vmatpush1.bf16.msra.mxu0 0
    %181 = vmatprep.subr.bf16.mxu0 0
    %182 = vmatpush1.bf16.msra.mxu0 0
    %183 = vmatprep.subr.bf16.mxu0 0
    %184 = vmatpush1.bf16.msra.mxu0 0
    %185 = vmatprep.subr.bf16.mxu0 0
    %186 = vmatpush1.bf16.msra.mxu0 0
    %187 = vmatprep.subr.bf16.mxu0 0
    %188 = vmatpush1.bf16.msra.mxu0 0
    %189 = vmatprep.subr.bf16.mxu0 0
    %190 = vmatpush1.bf16.msra.mxu0 0
    %191 = vmatprep.subr.bf16.mxu0 0
    %192 = vmatpush1.bf16.msra.mxu0 0
    %193 = vmatprep.subr.bf16.mxu0 0
    %194 = vmatpush1.bf16.msra.mxu0 0
    %195 = vmatprep.subr.bf16.mxu0 0
    %196 = vmatpush1.bf16.msra.mxu0 0
    %197 = vmatprep.subr.bf16.mxu0 0
    %198 = vmatpush1.bf16.msra.mxu0 0
    %199 = vmatprep.subr.bf16.mxu0 0
    %200 = vmatpush1.bf16.msra.mxu0 0
    %201 = vmatprep.mubr.bf16.mxu0 0
    %202 = vmatmul.mubr.bf16.gmra.mrb[0].mxu0 %v167
    %v203 = vpop.f32.mrb[0].mxu0
    %v204 = vadd.f32 0.0, %v203
    %v205 = vpop.f32.mrb[0].mxu0
    %v206 = vpop.f32.mrb[0].mxu0
    %v207 = vpop.f32.mrb[0].mxu0
    %208 = vdwg.mxu0
    %v211 = vunpack.c.l.b16 %v155
    %v212 = vunpack.c.l.b16 %v156
    %v213 = vpack.c.b16 %v212, %v211
    %v215 = vsel %vm165, %v105, 0
    %217 = vmatprep.subr.bf16.mxu0 0
    %218 = vmatpush1.bf16.msra.mxu0 %v213
    %219 = vmatprep.subr.bf16.mxu0 0
    %220 = vmatpush1.bf16.msra.mxu0 0
    %221 = vmatprep.subr.bf16.mxu0 0
    %222 = vmatpush1.bf16.msra.mxu0 0
    %223 = vmatprep.subr.bf16.mxu0 0
    %224 = vmatpush1.bf16.msra.mxu0 0
    %225 = vmatprep.subr.bf16.mxu0 0
    %226 = vmatpush1.bf16.msra.mxu0 0
    %227 = vmatprep.subr.bf16.mxu0 0
    %228 = vmatpush1.bf16.msra.mxu0 0
    %229 = vmatprep.subr.bf16.mxu0 0
    %230 = vmatpush1.bf16.msra.mxu0 0
    %231 = vmatprep.subr.bf16.mxu0 0
    %232 = vmatpush1.bf16.msra.mxu0 0
    %233 = vmatprep.subr.bf16.mxu0 0
    %234 = vmatpush1.bf16.msra.mxu0 0
    %235 = vmatprep.subr.bf16.mxu0 0
    %236 = vmatpush1.bf16.msra.mxu0 0
    %237 = vmatprep.subr.bf16.mxu0 0
    %238 = vmatpush1.bf16.msra.mxu0 0
    %239 = vmatprep.subr.bf16.mxu0 0
    %240 = vmatpush1.bf16.msra.mxu0 0
    %241 = vmatprep.subr.bf16.mxu0 0
    %242 = vmatpush1.bf16.msra.mxu0 0
    %243 = vmatprep.subr.bf16.mxu0 0
    %244 = vmatpush1.bf16.msra.mxu0 0
    %245 = vmatprep.subr.bf16.mxu0 0
    %246 = vmatpush1.bf16.msra.mxu0 0
    %247 = vmatprep.subr.bf16.mxu0 0
    %248 = vmatpush1.bf16.msra.mxu0 0
    %249 = vmatprep.mubr.bf16.mxu0 0
    %250 = vmatmul.mubr.bf16.gmra.mrb[0].mxu0 %v215
    %v251 = vpop.f32.mrb[0].mxu0
    %v252 = vadd.f32 %v204, %v251
    %v253 = vpop.f32.mrb[0].mxu0
    %v254 = vpop.f32.mrb[0].mxu0
    %v255 = vpop.f32.mrb[0].mxu0
    %256 = vdwg.mxu0
    %v257 = vld [vmem:[#allocation7] ss:$0 sm:$0xff]
    %v258 = vadd.f32 %v252, %v257
    %v259 = vmax.f32 %v258, 0.0
    %v260 = vpack.c.bf16 %v259, %v259
    %v261 = vld [vmem:[#allocation10] sm:$0xff]
    %v262 = vld [vmem:[#allocation10 + $0x8] sm:$0xf]
    %v263 = vld [vmem:[#allocation10 + $0x18] sm:$0xff]
    %v264 = vld [vmem:[#allocation10 + $0x20] sm:$0xf]
    %v265 = vld [vmem:[#allocation10 + $0x30] sm:$0xff]
    %v266 = vld [vmem:[#allocation10 + $0x38] sm:$0xf]
    %v267 = vld [vmem:[#allocation10 + $0x48] sm:$0xff]
    %v268 = vld [vmem:[#allocation10 + $0x50] sm:$0xf]
    %v269 = vld [vmem:[#allocation10 + $0x60] sm:$0xff]
    %v270 = vld [vmem:[#allocation10 + $0x68] sm:$0xf]
    %v271 = vld [vmem:[#allocation10 + $0x78] sm:$0xff]
    %v272 = vld [vmem:[#allocation10 + $0x80] sm:$0xf]
    %v273 = vld [vmem:[#allocation10 + $0x90] sm:$0xff]
    %v274 = vld [vmem:[#allocation10 + $0x98] sm:$0xf]
    %v275 = vld [vmem:[#allocation10 + $0xa8] sm:$0xff]
    %v276 = vld [vmem:[#allocation10 + $0xb0] sm:$0xf]
    %v277 = vld [vmem:[#allocation10 + $0xc0] sm:$0xff]
    %v278 = vld [vmem:[#allocation10 + $0xc8] sm:$0xf]
    %v279 = vld [vmem:[#allocation10 + $0xd8] sm:$0xff]
    %v280 = vld [vmem:[#allocation10 + $0xe0] sm:$0xf]
    %v281 = vld [vmem:[#allocation10 + $0xf0] sm:$0xff]
    %v282 = vld [vmem:[#allocation10 + $0xf8] sm:$0xf]
    %v283 = vld [vmem:[#allocation10 + $0x108] sm:$0xff]
    %v284 = vld [vmem:[#allocation10 + $0x110] sm:$0xf]
    %v285 = vld [vmem:[#allocation10 + $0x120] sm:$0xff]
    %v286 = vld [vmem:[#allocation10 + $0x128] sm:$0xf]
    %v287 = vld [vmem:[#allocation10 + $0x138] sm:$0xff]
    %v288 = vld [vmem:[#allocation10 + $0x140] sm:$0xf]
    %v289 = vld [vmem:[#allocation10 + $0x150] sm:$0xff]
    %v290 = vld [vmem:[#allocation10 + $0x158] sm:$0xf]
    %v291 = vld [vmem:[#allocation10 + $0x168] sm:$0xff]
    %v292 = vld [vmem:[#allocation10 + $0x170] sm:$0xf]
    %v325 = vunpack.c.l.b16 %v261
    %v326 = vunpack.c.h.b16 %v261
    %v327 = vunpack.c.l.b16 %v262
    %v328 = vunpack.c.l.b16 %v263
    %v329 = vunpack.c.h.b16 %v263
    %v330 = vunpack.c.l.b16 %v264
    %v331 = vunpack.c.l.b16 %v265
    %v332 = vunpack.c.h.b16 %v265
    %v333 = vunpack.c.l.b16 %v266
    %v334 = vunpack.c.l.b16 %v267
    %v335 = vunpack.c.h.b16 %v267
    %v336 = vunpack.c.l.b16 %v268
    %v337 = vunpack.c.l.b16 %v269
    %v338 = vunpack.c.h.b16 %v269
    %v339 = vunpack.c.l.b16 %v270
    %v340 = vunpack.c.l.b16 %v271
    %v341 = vunpack.c.h.b16 %v271
    %v342 = vunpack.c.l.b16 %v272
    %v343 = vunpack.c.l.b16 %v273
    %v344 = vunpack.c.h.b16 %v273
    %v345 = vunpack.c.l.b16 %v274
    %v346 = vunpack.c.l.b16 %v275
    %v347 = vunpack.c.h.b16 %v275
    %v348 = vunpack.c.l.b16 %v276
    %v349 = vunpack.c.l.b16 %v277
    %v350 = vunpack.c.h.b16 %v277
    %v351 = vunpack.c.l.b16 %v278
    %v352 = vunpack.c.l.b16 %v279
    %v353 = vunpack.c.h.b16 %v279
    %v354 = vunpack.c.l.b16 %v280
    %v355 = vunpack.c.l.b16 %v281
    %v356 = vunpack.c.h.b16 %v281
    %v357 = vunpack.c.l.b16 %v282
    %v358 = vunpack.c.l.b16 %v283
    %v359 = vunpack.c.h.b16 %v283
    %v360 = vunpack.c.l.b16 %v284
    %v361 = vunpack.c.l.b16 %v285
    %v362 = vunpack.c.h.b16 %v285
    %v363 = vunpack.c.l.b16 %v286
    %v364 = vunpack.c.l.b16 %v287
    %v365 = vunpack.c.h.b16 %v287
    %v366 = vunpack.c.l.b16 %v288
    %v367 = vunpack.c.l.b16 %v289
    %v368 = vunpack.c.h.b16 %v289
    %v369 = vunpack.c.l.b16 %v290
    %v370 = vunpack.c.l.b16 %v291
    %v371 = vunpack.c.h.b16 %v291
    %v372 = vunpack.c.l.b16 %v292
    %v373 = vpack.c.b16 %v328, %v325
    %v374 = vpack.c.b16 %v329, %v326
    %v375 = vpack.c.b16 %v330, %v327
    %v376 = vpack.c.b16 %v334, %v331
    %v377 = vpack.c.b16 %v335, %v332
    %v378 = vpack.c.b16 %v336, %v333
    %v379 = vpack.c.b16 %v340, %v337
    %v380 = vpack.c.b16 %v341, %v338
    %v381 = vpack.c.b16 %v342, %v339
    %v382 = vpack.c.b16 %v346, %v343
    %v383 = vpack.c.b16 %v347, %v344
    %v384 = vpack.c.b16 %v348, %v345
    %v385 = vpack.c.b16 %v352, %v349
    %v386 = vpack.c.b16 %v353, %v350
    %v387 = vpack.c.b16 %v354, %v351
    %v388 = vpack.c.b16 %v358, %v355
    %v389 = vpack.c.b16 %v359, %v356
    %v390 = vpack.c.b16 %v360, %v357
    %v391 = vpack.c.b16 %v364, %v361
    %v392 = vpack.c.b16 %v365, %v362
    %v393 = vpack.c.b16 %v366, %v363
    %v394 = vpack.c.b16 %v370, %v367
    %v395 = vpack.c.b16 %v371, %v368
    %v396 = vpack.c.b16 %v372, %v369
    %421 = vmatprep.subr.bf16.mxu0 %v374
    %422 = vmatpush1.bf16.msra.mxu0 %v373
    %423 = vmatprep.subr.bf16.mxu0 %v377
    %424 = vmatpush1.bf16.msra.mxu0 %v376
    %425 = vmatprep.subr.bf16.mxu0 %v380
    %426 = vmatpush1.bf16.msra.mxu0 %v379
    %427 = vmatprep.subr.bf16.mxu0 %v383
    %428 = vmatpush1.bf16.msra.mxu0 %v382
    %429 = vmatprep.subr.bf16.mxu0 %v386
    %430 = vmatpush1.bf16.msra.mxu0 %v385
    %431 = vmatprep.subr.bf16.mxu0 %v389
    %432 = vmatpush1.bf16.msra.mxu0 %v388
    %433 = vmatprep.subr.bf16.mxu0 %v392
    %434 = vmatpush1.bf16.msra.mxu0 %v391
    %435 = vmatprep.subr.bf16.mxu0 %v395
    %436 = vmatpush1.bf16.msra.mxu0 %v394
    %437 = vmatprep.subr.bf16.mxu0 0
    %438 = vmatpush1.bf16.msra.mxu0 0
    %439 = vmatprep.subr.bf16.mxu0 0
    %440 = vmatpush1.bf16.msra.mxu0 0
    %441 = vmatprep.subr.bf16.mxu0 0
    %442 = vmatpush1.bf16.msra.mxu0 0
    %443 = vmatprep.subr.bf16.mxu0 0
    %444 = vmatpush1.bf16.msra.mxu0 0
    %445 = vmatprep.subr.bf16.mxu0 0
    %446 = vmatpush1.bf16.msra.mxu0 0
    %447 = vmatprep.subr.bf16.mxu0 0
    %448 = vmatpush1.bf16.msra.mxu0 0
    %449 = vmatprep.subr.bf16.mxu0 0
    %450 = vmatpush1.bf16.msra.mxu0 0
    %451 = vmatprep.subr.bf16.mxu0 0
    %452 = vmatpush1.bf16.msra.mxu0 0
    %453 = vmatprep.mubr.bf16.mxu0 0
    %454 = vmatmul.mubr.bf16.gmra.mrb[0].mxu0 %v260
    %v455 = vpop.f32.mrb[0].mxu0
    %v456 = vadd.f32 0.0, %v455
    %v457 = vpop.f32.mrb[0].mxu0
    %v458 = vadd.f32 0.0, %v457
    %v459 = vpop.f32.mrb[0].mxu0
    %v460 = vpop.f32.mrb[0].mxu0
    %461 = vdwg.mxu0
    %462 = vmatprep.subr.bf16.mxu0 0
    %463 = vmatpush1.bf16.msra.mxu0 %v375
    %464 = vmatprep.subr.bf16.mxu0 0
    %465 = vmatpush1.bf16.msra.mxu0 %v378
    %466 = vmatprep.subr.bf16.mxu0 0
    %467 = vmatpush1.bf16.msra.mxu0 %v381
    %468 = vmatprep.subr.bf16.mxu0 0
    %469 = vmatpush1.bf16.msra.mxu0 %v384
    %470 = vmatprep.subr.bf16.mxu0 0
    %471 = vmatpush1.bf16.msra.mxu0 %v387
    %472 = vmatprep.subr.bf16.mxu0 0
    %473 = vmatpush1.bf16.msra.mxu0 %v390
    %474 = vmatprep.subr.bf16.mxu0 0
    %475 = vmatpush1.bf16.msra.mxu0 %v393
    %476 = vmatprep.subr.bf16.mxu0 0
    %477 = vmatpush1.bf16.msra.mxu0 %v396
    %478 = vmatprep.subr.bf16.mxu0 0
    %479 = vmatpush1.bf16.msra.mxu0 0
    %480 = vmatprep.subr.bf16.mxu0 0
    %481 = vmatpush1.bf16.msra.mxu0 0
    %482 = vmatprep.subr.bf16.mxu0 0
    %483 = vmatpush1.bf16.msra.mxu0 0
    %484 = vmatprep.subr.bf16.mxu0 0
    %485 = vmatpush1.bf16.msra.mxu0 0
    %486 = vmatprep.subr.bf16.mxu0 0
    %487 = vmatpush1.bf16.msra.mxu0 0
    %488 = vmatprep.subr.bf16.mxu0 0
    %489 = vmatpush1.bf16.msra.mxu0 0
    %490 = vmatprep.subr.bf16.mxu0 0
    %491 = vmatpush1.bf16.msra.mxu0 0
    %492 = vmatprep.subr.bf16.mxu0 0
    %493 = vmatpush1.bf16.msra.mxu0 0
    %494 = vmatprep.mubr.bf16.mxu0 0
    %495 = vmatmul.mubr.bf16.gmra.mrb[0].mxu0 %v260
    %v496 = vpop.f32.mrb[0].mxu0
    %v497 = vadd.f32 0.0, %v496
    %v498 = vpop.f32.mrb[0].mxu0
    %v499 = vpop.f32.mrb[0].mxu0
    %v500 = vpop.f32.mrb[0].mxu0
    %501 = vdwg.mxu0
    %v502 = vld [vmem:[#allocation7 + $0x1] ss:$0 sm:$0xff]
    %v503 = vadd.f32 %v456, %v502
    %v504 = vpack.c.bf16 %v503, %v503
    %v505 = vld [vmem:[#allocation7 + $0x2] ss:$0 sm:$0xff]
    %v506 = vadd.f32 %v458, %v505
    %v507 = vpack.c.bf16 %v506, %v506
    %v508 = vld [vmem:[#allocation7 + $0x3] ss:$0 sm:$0xff]
    %v509 = vadd.f32 %v497, %v508
    %v510 = vpack.c.bf16 %v509, %v509
    %511 = vmatprep.subr.bf16.mxu0 0
    %512 = vmatpush1.bf16.xpose.msra.mxu0 %v507
    %513 = vmatprep.subr.bf16.mxu0 0
    %514 = vmatpush1.bf16.xpose.msra.mxu0 0
    %515 = vmatprep.subr.bf16.mxu0 0
    %516 = vmatpush1.bf16.xpose.msra.mxu0 0
    %517 = vmatprep.subr.bf16.mxu0 0
    %518 = vmatpush1.bf16.xpose.msra.mxu0 0
    %519 = vmatprep.subr.bf16.mxu0 0
    %520 = vmatpush1.bf16.xpose.msra.mxu0 0
    %521 = vmatprep.subr.bf16.mxu0 0
    %522 = vmatpush1.bf16.xpose.msra.mxu0 0
    %523 = vmatprep.subr.bf16.mxu0 0
    %524 = vmatpush1.bf16.xpose.msra.mxu0 0
    %525 = vmatprep.subr.bf16.mxu0 0
    %526 = vmatpush1.bf16.xpose.msra.mxu0 0
    %527 = vmatprep.subr.bf16.mxu0 0
    %528 = vmatpush1.bf16.xpose.msra.mxu0 0
    %529 = vmatprep.subr.bf16.mxu0 0
    %530 = vmatpush1.bf16.xpose.msra.mxu0 0
    %531 = vmatprep.subr.bf16.mxu0 0
    %532 = vmatpush1.bf16.xpose.msra.mxu0 0
    %533 = vmatprep.subr.bf16.mxu0 0
    %534 = vmatpush1.bf16.xpose.msra.mxu0 0
    %535 = vmatprep.subr.bf16.mxu0 0
    %536 = vmatpush1.bf16.xpose.msra.mxu0 0
    %537 = vmatprep.subr.bf16.mxu0 0
    %538 = vmatpush1.bf16.xpose.msra.mxu0 0
    %539 = vmatprep.subr.bf16.mxu0 0
    %540 = vmatpush1.bf16.xpose.msra.mxu0 0
    %541 = vmatprep.subr.bf16.mxu0 0
    %542 = vmatpush1.bf16.xpose.msra.mxu0 0
    %543 = vmatprep.mubr.bf16.mxu0 0
    %544 = vmatmul.mubr.bf16.gmra.mrb[0].mxu0 %v504
    %v545 = vpop.f32.mrb[0].mxu0
    %v546 = vadd.f32 0.0, %v545
    %v547 = vpop.f32.mrb[0].mxu0
    %v548 = vpop.f32.mrb[0].mxu0
    %v549 = vpop.f32.mrb[0].mxu0
    %550 = vdwg.mxu0
    %v551 = vsel %vm106, %v546, -inf
    %552 = vmax.xlane.f32.xlu0 %v551
    %v553 = vpop.xlane.xlu0 %552
    %v554 = vsub.f32 %v546, %v553
    %v555 = vmul.f32 %v554, 1.442695
    %v556 = vpow.pop %v555
    %v557 = vsel %vm106, %v556, 0.0
    %558 = vadd.xlane.f32.xlu0 %v557
    %v559 = vpop.xlane.xlu0 %558
    %v560 = vrcp.pop %v559
    %v561 = vmul.f32 %v556, %v560
    %v562 = vpack.c.bf16 %v561, %v561
    %v564 = vsel %vm106, %v562, 0
    %v567 = vsel %vm110, %v510, 0
    %569 = vmatprep.subr.bf16.mxu0 0
    %570 = vmatpush1.bf16.msra.mxu0 %v567
    %571 = vmatprep.subr.bf16.mxu0 0
    %572 = vmatpush1.bf16.msra.mxu0 0
    %573 = vmatprep.subr.bf16.mxu0 0
    %574 = vmatpush1.bf16.msra.mxu0 0
    %575 = vmatprep.subr.bf16.mxu0 0
    %576 = vmatpush1.bf16.msra.mxu0 0
    %577 = vmatprep.subr.bf16.mxu0 0
    %578 = vmatpush1.bf16.msra.mxu0 0
    %579 = vmatprep.subr.bf16.mxu0 0
    %580 = vmatpush1.bf16.msra.mxu0 0
    %581 = vmatprep.subr.bf16.mxu0 0
    %582 = vmatpush1.bf16.msra.mxu0 0
    %583 = vmatprep.subr.bf16.mxu0 0
    %584 = vmatpush1.bf16.msra.mxu0 0
    %585 = vmatprep.subr.bf16.mxu0 0
    %586 = vmatpush1.bf16.msra.mxu0 0
    %587 = vmatprep.subr.bf16.mxu0 0
    %588 = vmatpush1.bf16.msra.mxu0 0
    %589 = vmatprep.subr.bf16.mxu0 0
    %590 = vmatpush1.bf16.msra.mxu0 0
    %591 = vmatprep.subr.bf16.mxu0 0
    %592 = vmatpush1.bf16.msra.mxu0 0
    %593 = vmatprep.subr.bf16.mxu0 0
    %594 = vmatpush1.bf16.msra.mxu0 0
    %595 = vmatprep.subr.bf16.mxu0 0
    %596 = vmatpush1.bf16.msra.mxu0 0
    %597 = vmatprep.subr.bf16.mxu0 0
    %598 = vmatpush1.bf16.msra.mxu0 0
    %599 = vmatprep.subr.bf16.mxu0 0
    %600 = vmatpush1.bf16.msra.mxu0 0
    %601 = vmatprep.mubr.bf16.mxu0 0
    %602 = vmatmul.mubr.bf16.gmra.mrb[0].mxu0 %v564
    %v603 = vpop.f32.mrb[0].mxu0
    %v604 = vadd.f32 0.0, %v603
    %v605 = vpop.f32.mrb[0].mxu0
    %v606 = vpop.f32.mrb[0].mxu0
    %v607 = vpop.f32.mrb[0].mxu0
    %608 = vdwg.mxu0
    %v609 = vpack.c.bf16 %v604, %v604
    %v610 = vld [vmem:[#allocation10 + $0xc] sm:$0xf]
    %v611 = vld [vmem:[#allocation10 + $0x24] sm:$0xf]
    %v612 = vld [vmem:[#allocation10 + $0x3c] sm:$0xf]
    %v613 = vld [vmem:[#allocation10 + $0x54] sm:$0xf]
    %v614 = vld [vmem:[#allocation10 + $0x6c] sm:$0xf]
    %v615 = vld [vmem:[#allocation10 + $0x84] sm:$0xf]
    %v616 = vld [vmem:[#allocation10 + $0x9c] sm:$0xf]
    %v617 = vld [vmem:[#allocation10 + $0xb4] sm:$0xf]
    %v618 = vld [vmem:[#allocation10 + $0xcc] sm:$0xf]
    %v619 = vld [vmem:[#allocation10 + $0xe4] sm:$0xf]
    %v620 = vld [vmem:[#allocation10 + $0xfc] sm:$0xf]
    %v621 = vld [vmem:[#allocation10 + $0x114] sm:$0xf]
    %v622 = vld [vmem:[#allocation10 + $0x12c] sm:$0xf]
    %v623 = vld [vmem:[#allocation10 + $0x144] sm:$0xf]
    %v624 = vld [vmem:[#allocation10 + $0x15c] sm:$0xf]
    %v625 = vld [vmem:[#allocation10 + $0x174] sm:$0xf]
    %v626 = vld [vmem:[#allocation7 + $0x4] ss:$0 sm:$0xff]
    %v643 = vunpack.c.l.b16 %v610
    %v644 = vunpack.c.l.b16 %v611
    %v645 = vunpack.c.l.b16 %v612
    %v646 = vunpack.c.l.b16 %v613
    %v647 = vunpack.c.l.b16 %v614
    %v648 = vunpack.c.l.b16 %v615
    %v649 = vunpack.c.l.b16 %v616
    %v650 = vunpack.c.l.b16 %v617
    %v651 = vunpack.c.l.b16 %v618
    %v652 = vunpack.c.l.b16 %v619
    %v653 = vunpack.c.l.b16 %v620
    %v654 = vunpack.c.l.b16 %v621
    %v655 = vunpack.c.l.b16 %v622
    %v656 = vunpack.c.l.b16 %v623
    %v657 = vunpack.c.l.b16 %v624
    %v658 = vunpack.c.l.b16 %v625
    %v659 = vpack.c.b16 %v644, %v643
    %v660 = vpack.c.b16 %v646, %v645
    %v661 = vpack.c.b16 %v648, %v647
    %v662 = vpack.c.b16 %v650, %v649
    %v663 = vpack.c.b16 %v652, %v651
    %v664 = vpack.c.b16 %v654, %v653
    %v665 = vpack.c.b16 %v656, %v655
    %v666 = vpack.c.b16 %v658, %v657
    %675 = vmatprep.subr.bf16.mxu0 0
    %676 = vmatpush1.bf16.msra.mxu0 %v659
    %677 = vmatprep.subr.bf16.mxu0 0
    %678 = vmatpush1.bf16.msra.mxu0 %v660
    %679 = vmatprep.subr.bf16.mxu0 0
    %680 = vmatpush1.bf16.msra.mxu0 %v661
    %681 = vmatprep.subr.bf16.mxu0 0
    %682 = vmatpush1.bf16.msra.mxu0 %v662
    %683 = vmatprep.subr.bf16.mxu0 0
    %684 = vmatpush1.bf16.msra.mxu0 %v663
    %685 = vmatprep.subr.bf16.mxu0 0
    %686 = vmatpush1.bf16.msra.mxu0 %v664
    %687 = vmatprep.subr.bf16.mxu0 0
    %688 = vmatpush1.bf16.msra.mxu0 %v665
    %689 = vmatprep.subr.bf16.mxu0 0
    %690 = vmatpush1.bf16.msra.mxu0 %v666
    %691 = vmatprep.subr.bf16.mxu0 0
    %692 = vmatpush1.bf16.msra.mxu0 0
    %693 = vmatprep.subr.bf16.mxu0 0
    %694 = vmatpush1.bf16.msra.mxu0 0
    %695 = vmatprep.subr.bf16.mxu0 0
    %696 = vmatpush1.bf16.msra.mxu0 0
    %697 = vmatprep.subr.bf16.mxu0 0
    %698 = vmatpush1.bf16.msra.mxu0 0
    %699 = vmatprep.subr.bf16.mxu0 0
    %700 = vmatpush1.bf16.msra.mxu0 0
    %701 = vmatprep.subr.bf16.mxu0 0
    %702 = vmatpush1.bf16.msra.mxu0 0
    %703 = vmatprep.subr.bf16.mxu0 0
    %704 = vmatpush1.bf16.msra.mxu0 0
    %705 = vmatprep.subr.bf16.mxu0 0
    %706 = vmatpush1.bf16.msra.mxu0 0
    %707 = vmatprep.mubr.bf16.mxu0 0
    %708 = vmatmul.mubr.bf16.gmra.mrb[0].mxu0 %v609
    %v709 = vpop.f32.mrb[0].mxu0
    %v710 = vadd.f32 %v626, %v709
    %v711 = vpop.f32.mrb[0].mxu0
    %v712 = vpop.f32.mrb[0].mxu0
    %v713 = vpop.f32.mrb[0].mxu0
    %714 = vdwg.mxu0
    %v715 = vadd.f32 %v259, %v710
    %716 = vadd.xlane.f32.xlu0 %v715
    %v717 = vpop.xlane.xlu0 %716
    %v718 = vrcp.pop 128.0
    %v719 = vmul.f32 %v717, %v718
    %v720 = vsub.f32 %v715, %v719
    %v721 = vmul.f32 %v720, %v720
    %722 = vadd.xlane.f32.xlu0 %v721
    %v723 = vpop.xlane.xlu0 %722
    %v724 = vmul.f32 %v723, %v718
    %v725 = vadd.f32 %v724, 1e-05
    %v726 = vrsqrt.pop %v725
    %v727 = vmul.f32 %v720, %v726
    %v728 = vld [vmem:[#allocation7 + $0x5] ss:$0 sm:$0xff]
    %v729 = vmul.f32 %v727, %v728
    %v730 = vld [vmem:[#allocation7 + $0x6] ss:$0 sm:$0xff]
    %v731 = vadd.f32 %v729, %v730
    %v732 = vpack.c.bf16 %v731, %v731
    %v733 = vld [vmem:[#allocation10 + $0x10] sm:$0xff]
    %v734 = vld [vmem:[#allocation10 + $0x28] sm:$0xff]
    %v735 = vld [vmem:[#allocation10 + $0x40] sm:$0xff]
    %v736 = vld [vmem:[#allocation10 + $0x58] sm:$0xff]
    %v737 = vld [vmem:[#allocation10 + $0x70] sm:$0xff]
    %v738 = vld [vmem:[#allocation10 + $0x88] sm:$0xff]
    %v739 = vld [vmem:[#allocation10 + $0xa0] sm:$0xff]
    %v740 = vld [vmem:[#allocation10 + $0xb8] sm:$0xff]
    %v741 = vld [vmem:[#allocation10 + $0xd0] sm:$0xff]
    %v742 = vld [vmem:[#allocation10 + $0xe8] sm:$0xff]
    %v743 = vld [vmem:[#allocation10 + $0x100] sm:$0xff]
    %v744 = vld [vmem:[#allocation10 + $0x118] sm:$0xff]
    %v745 = vld [vmem:[#allocation10 + $0x130] sm:$0xff]
    %v746 = vld [vmem:[#allocation10 + $0x148] sm:$0xff]
    %v747 = vld [vmem:[#allocation10 + $0x160] sm:$0xff]
    %v748 = vld [vmem:[#allocation10 + $0x178] sm:$0xff]
    %s749 = scalar_lea.vmem [#allocation7], 7
    %v750 = vld [vmem:[%s749] ss:$8 sm:$0x3]
    %v752 = vlaneseq
    %v753 = vshrl.u32 %v752, 7
    %v754 = vsub.s32 0, %v753
    %v755 = vrot.slane %v750, %v754
    %v756 = vlaneseq
    %v757 = vshrl.u32 %v756, 7
    %v758 = vsub.s32 1, %v757
    %v759 = vrot.slane %v750, %v758
    %v778 = vunpack.c.l.b16 %v733
    %v779 = vunpack.c.h.b16 %v733
    %v780 = vunpack.c.l.b16 %v734
    %v781 = vunpack.c.h.b16 %v734
    %v782 = vunpack.c.l.b16 %v735
    %v783 = vunpack.c.h.b16 %v735
    %v784 = vunpack.c.l.b16 %v736
    %v785 = vunpack.c.h.b16 %v736
    %v786 = vunpack.c.l.b16 %v737
    %v787 = vunpack.c.h.b16 %v737
    %v788 = vunpack.c.l.b16 %v738
    %v789 = vunpack.c.h.b16 %v738
    %v790 = vunpack.c.l.b16 %v739
    %v791 = vunpack.c.h.b16 %v739
    %v792 = vunpack.c.l.b16 %v740
    %v793 = vunpack.c.h.b16 %v740
    %v794 = vunpack.c.l.b16 %v741
    %v795 = vunpack.c.h.b16 %v741
    %v796 = vunpack.c.l.b16 %v742
    %v797 = vunpack.c.h.b16 %v742
    %v798 = vunpack.c.l.b16 %v743
    %v799 = vunpack.c.h.b16 %v743
    %v800 = vunpack.c.l.b16 %v744
    %v801 = vunpack.c.h.b16 %v744
    %v802 = vunpack.c.l.b16 %v745
    %v803 = vunpack.c.h.b16 %v745
    %v804 = vunpack.c.l.b16 %v746
    %v805 = vunpack.c.h.b16 %v746
    %v806 = vunpack.c.l.b16 %v747
    %v807 = vunpack.c.h.b16 %v747
    %v808 = vunpack.c.l.b16 %v748
    %v809 = vunpack.c.h.b16 %v748
    %v810 = vpack.c.b16 %v780, %v778
    %v811 = vpack.c.b16 %v781, %v779
    %v812 = vpack.c.b16 %v784, %v782
    %v813 = vpack.c.b16 %v785, %v783
    %v814 = vpack.c.b16 %v788, %v786
    %v815 = vpack.c.b16 %v789, %v787
    %v816 = vpack.c.b16 %v792, %v790
    %v817 = vpack.c.b16 %v793, %v791
    %v818 = vpack.c.b16 %v796, %v794
    %v819 = vpack.c.b16 %v797, %v795
    %v820 = vpack.c.b16 %v800, %v798
    %v821 = vpack.c.b16 %v801, %v799
    %v822 = vpack.c.b16 %v804, %v802
    %v823 = vpack.c.b16 %v805, %v803
    %v824 = vpack.c.b16 %v808, %v806
    %v825 = vpack.c.b16 %v809, %v807
    %842 = vmatprep.subr.bf16.mxu0 %v811
    %843 = vmatpush1.bf16.msra.mxu0 %v810
    %844 = vmatprep.subr.bf16.mxu0 %v813
    %845 = vmatpush1.bf16.msra.mxu0 %v812
    %846 = vmatprep.subr.bf16.mxu0 %v815
    %847 = vmatpush1.bf16.msra.mxu0 %v814
    %848 = vmatprep.subr.bf16.mxu0 %v817
    %849 = vmatpush1.bf16.msra.mxu0 %v816
    %850 = vmatprep.subr.bf16.mxu0 %v819
    %851 = vmatpush1.bf16.msra.mxu0 %v818
    %852 = vmatprep.subr.bf16.mxu0 %v821
    %853 = vmatpush1.bf16.msra.mxu0 %v820
    %854 = vmatprep.subr.bf16.mxu0 %v823
    %855 = vmatpush1.bf16.msra.mxu0 %v822
    %856 = vmatprep.subr.bf16.mxu0 %v825
    %857 = vmatpush1.bf16.msra.mxu0 %v824
    %858 = vmatprep.subr.bf16.mxu0 0
    %859 = vmatpush1.bf16.msra.mxu0 0
    %860 = vmatprep.subr.bf16.mxu0 0
    %861 = vmatpush1.bf16.msra.mxu0 0
    %862 = vmatprep.subr.bf16.mxu0 0
    %863 = vmatpush1.bf16.msra.mxu0 0
    %864 = vmatprep.subr.bf16.mxu0 0
    %865 = vmatpush1.bf16.msra.mxu0 0
    %866 = vmatprep.subr.bf16.mxu0 0
    %867 = vmatpush1.bf16.msra.mxu0 0
    %868 = vmatprep.subr.bf16.mxu0 0
    %869 = vmatpush1.bf16.msra.mxu0 0
    %870 = vmatprep.subr.bf16.mxu0 0
    %871 = vmatpush1.bf16.msra.mxu0 0
    %872 = vmatprep.subr.bf16.mxu0 0
    %873 = vmatpush1.bf16.msra.mxu0 0
    %874 = vmatprep.mubr.bf16.mxu0 0
    %875 = vmatmul.mubr.bf16.gmra.mrb[0].mxu0 %v732
    %v876 = vpop.f32.mrb[0].mxu0
    %v877 = vadd.f32 %v755, %v876
    %v878 = vpop.f32.mrb[0].mxu0
    %v879 = vadd.f32 %v759, %v878
    %v880 = vpop.f32.mrb[0].mxu0
    %v881 = vpop.f32.mrb[0].mxu0
    %882 = vdwg.mxu0
    %v883 = vmax.f32 %v877, 0.0
    %v884 = vmax.f32 %v879, 0.0
    %v885 = vpack.c.bf16 %v883, %v883
    %v886 = vpack.c.bf16 %v884, %v884
    %v887 = vld [vmem:[#allocation11] sm:$0xf]
    %v888 = vld [vmem:[#allocation11 + $0xc] sm:$0xf]
    %v889 = vld [vmem:[#allocation11 + $0x18] sm:$0xf]
    %v890 = vld [vmem:[#allocation11 + $0x24] sm:$0xf]
    %v891 = vld [vmem:[#allocation11 + $0x30] sm:$0xf]
    %v892 = vld [vmem:[#allocation11 + $0x3c] sm:$0xf]
    %v893 = vld [vmem:[#allocation11 + $0x48] sm:$0xf]
    %v894 = vld [vmem:[#allocation11 + $0x54] sm:$0xf]
    %v895 = vld [vmem:[#allocation11 + $0x60] sm:$0xf]
    %v896 = vld [vmem:[#allocation11 + $0x6c] sm:$0xf]
    %v897 = vld [vmem:[#allocation11 + $0x78] sm:$0xf]
    %v898 = vld [vmem:[#allocation11 + $0x84] sm:$0xf]
    %v899 = vld [vmem:[#allocation11 + $0x90] sm:$0xf]
    %v900 = vld [vmem:[#allocation11 + $0x9c] sm:$0xf]
    %v901 = vld [vmem:[#allocation11 + $0xa8] sm:$0xf]
    %v902 = vld [vmem:[#allocation11 + $0xb4] sm:$0xf]
    %v903 = vld [vmem:[#allocation11 + $0xc0] sm:$0xf]
    %v904 = vld [vmem:[#allocation11 + $0xcc] sm:$0xf]
    %v905 = vld [vmem:[#allocation11 + $0xd8] sm:$0xf]
    %v906 = vld [vmem:[#allocation11 + $0xe4] sm:$0xf]
    %v907 = vld [vmem:[#allocation11 + $0xf0] sm:$0xf]
    %v908 = vld [vmem:[#allocation11 + $0xfc] sm:$0xf]
    %v909 = vld [vmem:[#allocation11 + $0x108] sm:$0xf]
    %v910 = vld [vmem:[#allocation11 + $0x114] sm:$0xf]
    %v911 = vld [vmem:[#allocation11 + $0x120] sm:$0xf]
    %v912 = vld [vmem:[#allocation11 + $0x12c] sm:$0xf]
    %v913 = vld [vmem:[#allocation11 + $0x138] sm:$0xf]
    %v914 = vld [vmem:[#allocation11 + $0x144] sm:$0xf]
    %v915 = vld [vmem:[#allocation11 + $0x150] sm:$0xf]
    %v916 = vld [vmem:[#allocation11 + $0x15c] sm:$0xf]
    %v917 = vld [vmem:[#allocation11 + $0x168] sm:$0xf]
    %v918 = vld [vmem:[#allocation11 + $0x174] sm:$0xf]
    %v919 = vld [vmem:[#allocation7 + $0x10] ss:$0 sm:$0xff]
    %v952 = vunpack.c.l.b16 %v887
    %v953 = vunpack.c.l.b16 %v888
    %v954 = vunpack.c.l.b16 %v889
    %v955 = vunpack.c.l.b16 %v890
    %v956 = vunpack.c.l.b16 %v891
    %v957 = vunpack.c.l.b16 %v892
    %v958 = vunpack.c.l.b16 %v893
    %v959 = vunpack.c.l.b16 %v894
    %v960 = vunpack.c.l.b16 %v895
    %v961 = vunpack.c.l.b16 %v896
    %v962 = vunpack.c.l.b16 %v897
    %v963 = vunpack.c.l.b16 %v898
    %v964 = vunpack.c.l.b16 %v899
    %v965 = vunpack.c.l.b16 %v900
    %v966 = vunpack.c.l.b16 %v901
    %v967 = vunpack.c.l.b16 %v902
    %v968 = vunpack.c.l.b16 %v903
    %v969 = vunpack.c.l.b16 %v904
    %v970 = vunpack.c.l.b16 %v905
    %v971 = vunpack.c.l.b16 %v906
    %v972 = vunpack.c.l.b16 %v907
    %v973 = vunpack.c.l.b16 %v908
    %v974 = vunpack.c.l.b16 %v909
    %v975 = vunpack.c.l.b16 %v910
    %v976 = vunpack.c.l.b16 %v911
    %v977 = vunpack.c.l.b16 %v912
    %v978 = vunpack.c.l.b16 %v913
    %v979 = vunpack.c.l.b16 %v914
    %v980 = vunpack.c.l.b16 %v915
    %v981 = vunpack.c.l.b16 %v916
    %v982 = vunpack.c.l.b16 %v917
    %v983 = vunpack.c.l.b16 %v918
    %v984 = vpack.c.b16 %v953, %v952
    %v985 = vpack.c.b16 %v955, %v954
    %v986 = vpack.c.b16 %v957, %v956
    %v987 = vpack.c.b16 %v959, %v958
    %v988 = vpack.c.b16 %v961, %v960
    %v989 = vpack.c.b16 %v963, %v962
    %v990 = vpack.c.b16 %v965, %v964
    %v991 = vpack.c.b16 %v967, %v966
    %v992 = vpack.c.b16 %v969, %v968
    %v993 = vpack.c.b16 %v971, %v970
    %v994 = vpack.c.b16 %v973, %v972
    %v995 = vpack.c.b16 %v975, %v974
    %v996 = vpack.c.b16 %v977, %v976
    %v997 = vpack.c.b16 %v979, %v978
    %v998 = vpack.c.b16 %v981, %v980
    %v999 = vpack.c.b16 %v983, %v982
    %1016 = vmatprep.subr.bf16.mxu0 0
    %1017 = vmatpush1.bf16.msra.mxu0 %v984
    %1018 = vmatprep.subr.bf16.mxu0 0
    %1019 = vmatpush1.bf16.msra.mxu0 %v985
    %1020 = vmatprep.subr.bf16.mxu0 0
    %1021 = vmatpush1.bf16.msra.mxu0 %v986
    %1022 = vmatprep.subr.bf16.mxu0 0
    %1023 = vmatpush1.bf16.msra.mxu0 %v987
    %1024 = vmatprep.subr.bf16.mxu0 0
    %1025 = vmatpush1.bf16.msra.mxu0 %v988
    %1026 = vmatprep.subr.bf16.mxu0 0
    %1027 = vmatpush1.bf16.msra.mxu0 %v989
    %1028 = vmatprep.subr.bf16.mxu0 0
    %1029 = vmatpush1.bf16.msra.mxu0 %v990
    %1030 = vmatprep.subr.bf16.mxu0 0
    %1031 = vmatpush1.bf16.msra.mxu0 %v991
    %1032 = vmatprep.subr.bf16.mxu0 0
    %1033 = vmatpush1.bf16.msra.mxu0 %v992
    %1034 = vmatprep.subr.bf16.mxu0 0
    %1035 = vmatpush1.bf16.msra.mxu0 %v993
    %1036 = vmatprep.subr.bf16.mxu0 0
    %1037 = vmatpush1.bf16.msra.mxu0 %v994
    %1038 = vmatprep.subr.bf16.mxu0 0
    %1039 = vmatpush1.bf16.msra.mxu0 %v995
    %1040 = vmatprep.subr.bf16.mxu0 0
    %1041 = vmatpush1.bf16.msra.mxu0 %v996
    %1042 = vmatprep.subr.bf16.mxu0 0
    %1043 = vmatpush1.bf16.msra.mxu0 %v997
    %1044 = vmatprep.subr.bf16.mxu0 0
    %1045 = vmatpush1.bf16.msra.mxu0 %v998
    %1046 = vmatprep.subr.bf16.mxu0 0
    %1047 = vmatpush1.bf16.msra.mxu0 %v999
    %1048 = vmatprep.mubr.bf16.mxu0 %v886
    %1049 = vmatmul.mubr.bf16.gmra.mrb[0].mxu0 %v885
    %v1050 = vpop.f32.mrb[0].mxu0
    %v1051 = vadd.f32 %v919, %v1050
    %v1052 = vpop.f32.mrb[0].mxu0
    %v1053 = vpop.f32.mrb[0].mxu0
    %v1054 = vpop.f32.mrb[0].mxu0
    %1055 = vdwg.mxu0
    %v1056 = vadd.f32 %v731, %v1051
    %1057 = vadd.xlane.f32.xlu0 %v1056
    %v1058 = vpop.xlane.xlu0 %1057
    %v1059 = vmul.f32 %v1058, %v718
    %v1060 = vsub.f32 %v1056, %v1059
    %v1061 = vmul.f32 %v1060, %v1060
    %1062 = vadd.xlane.f32.xlu0 %v1061
    %v1063 = vpop.xlane.xlu0 %1062
    %v1064 = vmul.f32 %v1063, %v718
    %v1065 = vadd.f32 %v1064, 1e-05
    %v1066 = vrsqrt.pop %v1065
    %v1067 = vmul.f32 %v1060, %v1066
    %v1068 = vld [vmem:[#allocation7 + $0x11] ss:$0 sm:$0xff]
    %v1069 = vmul.f32 %v1067, %v1068
    %v1070 = vld [vmem:[#allocation7 + $0x12] ss:$0 sm:$0xff]
    %v1071 = vadd.f32 %v1069, %v1070
    %1072 = vadd.xlane.f32.xlu0 %v259
    %v1073 = vpop.xlane.xlu0 %1072
    %v1074 = vmul.f32 %v1073, %v718
    %v1075 = vsub.f32 %v259, %v1074
    %v1076 = vmul.f32 %v1075, %v1075
    %1077 = vadd.xlane.f32.xlu0 %v1076
    %v1078 = vpop.xlane.xlu0 %1077
    %v1079 = vmul.f32 %v1078, %v718
    %v1080 = vadd.f32 %v1079, 1e-05
    %v1081 = vrsqrt.pop %v1080
    %v1082 = vmul.f32 %v1075, %v1081
    %v1083 = vld [vmem:[#allocation7 + $0x13] ss:$0 sm:$0xff]
    %v1084 = vmul.f32 %v1082, %v1083
    %v1085 = vld [vmem:[#allocation7 + $0x14] ss:$0 sm:$0xff]
    %v1086 = vadd.f32 %v1084, %v1085
    %v1087 = vpack.c.bf16 %v1086, %v1086
    %v1088 = vpack.c.bf16 %v1071, %v1071
    %v1089 = vld [vmem:[#allocation11 + $0x4] sm:$0xff]
    %v1090 = vld [vmem:[#allocation11 + $0x10] sm:$0xff]
    %v1091 = vld [vmem:[#allocation11 + $0x1c] sm:$0xff]
    %v1092 = vld [vmem:[#allocation11 + $0x28] sm:$0xff]
    %v1093 = vld [vmem:[#allocation11 + $0x34] sm:$0xff]
    %v1094 = vld [vmem:[#allocation11 + $0x40] sm:$0xff]
    %v1095 = vld [vmem:[#allocation11 + $0x4c] sm:$0xff]
    %v1096 = vld [vmem:[#allocation11 + $0x58] sm:$0xff]
    %v1097 = vld [vmem:[#allocation11 + $0x64] sm:$0xff]
    %v1098 = vld [vmem:[#allocation11 + $0x70] sm:$0xff]
    %v1099 = vld [vmem:[#allocation11 + $0x7c] sm:$0xff]
    %v1100 = vld [vmem:[#allocation11 + $0x88] sm:$0xff]
    %v1101 = vld [vmem:[#allocation11 + $0x94] sm:$0xff]
    %v1102 = vld [vmem:[#allocation11 + $0xa0] sm:$0xff]
    %v1103 = vld [vmem:[#allocation11 + $0xac] sm:$0xff]
    %v1104 = vld [vmem:[#allocation11 + $0xb8] sm:$0xff]
    %v1105 = vld [vmem:[#allocation11 + $0xc4] sm:$0xff]
    %v1106 = vld [vmem:[#allocation11 + $0xd0] sm:$0xff]
    %v1107 = vld [vmem:[#allocation11 + $0xdc] sm:$0xff]
    %v1108 = vld [vmem:[#allocation11 + $0xe8] sm:$0xff]
    %v1109 = vld [vmem:[#allocation11 + $0xf4] sm:$0xff]
    %v1110 = vld [vmem:[#allocation11 + $0x100] sm:$0xff]
    %v1111 = vld [vmem:[#allocation11 + $0x10c] sm:$0xff]
    %v1112 = vld [vmem:[#allocation11 + $0x118] sm:$0xff]
    %v1113 = vld [vmem:[#allocation11 + $0x124] sm:$0xff]
    %v1114 = vld [vmem:[#allocation11 + $0x130] sm:$0xff]
    %v1115 = vld [vmem:[#allocation11 + $0x13c] sm:$0xff]
    %v1116 = vld [vmem:[#allocation11 + $0x148] sm:$0xff]
    %v1117 = vld [vmem:[#allocation11 + $0x154] sm:$0xff]
    %v1118 = vld [vmem:[#allocation11 + $0x160] sm:$0xff]
    %v1119 = vld [vmem:[#allocation11 + $0x16c] sm:$0xff]
    %v1120 = vld [vmem:[#allocation11 + $0x178] sm:$0xff]
    %v1153 = vunpack.c.l.b16 %v1089
    %v1154 = vunpack.c.h.b16 %v1089
    %v1155 = vunpack.c.l.b16 %v1090
    %v1156 = vunpack.c.h.b16 %v1090
    %v1157 = vunpack.c.l.b16 %v1091
    %v1158 = vunpack.c.h.b16 %v1091
    %v1159 = vunpack.c.l.b16 %v1092
    %v1160 = vunpack.c.h.b16 %v1092
    %v1161 = vunpack.c.l.b16 %v1093
    %v1162 = vunpack.c.h.b16 %v1093
    %v1163 = vunpack.c.l.b16 %v1094
    %v1164 = vunpack.c.h.b16 %v1094
    %v1165 = vunpack.c.l.b16 %v1095
    %v1166 = vunpack.c.h.b16 %v1095
    %v1167 = vunpack.c.l.b16 %v1096
    %v1168 = vunpack.c.h.b16 %v1096
    %v1169 = vunpack.c.l.b16 %v1097
    %v1170 = vunpack.c.h.b16 %v1097
    %v1171 = vunpack.c.l.b16 %v1098
    %v1172 = vunpack.c.h.b16 %v1098
    %v1173 = vunpack.c.l.b16 %v1099
    %v1174 = vunpack.c.h.b16 %v1099
    %v1175 = vunpack.c.l.b16 %v1100
    %v1176 = vunpack.c.h.b16 %v1100
    %v1177 = vunpack.c.l.b16 %v1101
    %v1178 = vunpack.c.h.b16 %v1101
    %v1179 = vunpack.c.l.b16 %v1102
    %v1180 = vunpack.c.h.b16 %v1102
    %v1181 = vunpack.c.l.b16 %v1103
    %v1182 = vunpack.c.h.b16 %v1103
    %v1183 = vunpack.c.l.b16 %v1104
    %v1184 = vunpack.c.h.b16 %v1104
    %v1185 = vunpack.c.l.b16 %v1105
    %v1186 = vunpack.c.h.b16 %v1105
    %v1187 = vunpack.c.l.b16 %v1106
    %v1188 = vunpack.c.h.b16 %v1106
    %v1189 = vunpack.c.l.b16 %v1107
    %v1190 = vunpack.c.h.b16 %v1107
    %v1191 = vunpack.c.l.b16 %v1108
    %v1192 = vunpack.c.h.b16 %v1108
    %v1193 = vunpack.c.l.b16 %v1109
    %v1194 = vunpack.c.h.b16 %v1109
    %v1195 = vunpack.c.l.b16 %v1110
    %v1196 = vunpack.c.h.b16 %v1110
    %v1197 = vunpack.c.l.b16 %v1111
    %v1198 = vunpack.c.h.b16 %v1111
    %v1199 = vunpack.c.l.b16 %v1112
    %v1200 = vunpack.c.h.b16 %v1112
    %v1201 = vunpack.c.l.b16 %v1113
    %v1202 = vunpack.c.h.b16 %v1113
    %v1203 = vunpack.c.l.b16 %v1114
    %v1204 = vunpack.c.h.b16 %v1114
    %v1205 = vunpack.c.l.b16 %v1115
    %v1206 = vunpack.c.h.b16 %v1115
    %v1207 = vunpack.c.l.b16 %v1116
    %v1208 = vunpack.c.h.b16 %v1116
    %v1209 = vunpack.c.l.b16 %v1117
    %v1210 = vunpack.c.h.b16 %v1117
    %v1211 = vunpack.c.l.b16 %v1118
    %v1212 = vunpack.c.h.b16 %v1118
    %v1213 = vunpack.c.l.b16 %v1119
    %v1214 = vunpack.c.h.b16 %v1119
    %v1215 = vunpack.c.l.b16 %v1120
    %v1216 = vunpack.c.h.b16 %v1120
    %v1217 = vpack.c.b16 %v1155, %v1153
    %v1218 = vpack.c.b16 %v1156, %v1154
    %v1219 = vpack.c.b16 %v1159, %v1157
    %v1220 = vpack.c.b16 %v1160, %v1158
    %v1221 = vpack.c.b16 %v1163, %v1161
    %v1222 = vpack.c.b16 %v1164, %v1162
    %v1223 = vpack.c.b16 %v1167, %v1165
    %v1224 = vpack.c.b16 %v1168, %v1166
    %v1225 = vpack.c.b16 %v1171, %v1169
    %v1226 = vpack.c.b16 %v1172, %v1170
    %v1227 = vpack.c.b16 %v1175, %v1173
    %v1228 = vpack.c.b16 %v1176, %v1174
    %v1229 = vpack.c.b16 %v1179, %v1177
    %v1230 = vpack.c.b16 %v1180, %v1178
    %v1231 = vpack.c.b16 %v1183, %v1181
    %v1232 = vpack.c.b16 %v1184, %v1182
    %v1233 = vpack.c.b16 %v1187, %v1185
    %v1234 = vpack.c.b16 %v1188, %v1186
    %v1235 = vpack.c.b16 %v1191, %v1189
    %v1236 = vpack.c.b16 %v1192, %v1190
    %v1237 = vpack.c.b16 %v1195, %v1193
    %v1238 = vpack.c.b16 %v1196, %v1194
    %v1239 = vpack.c.b16 %v1199, %v1197
    %v1240 = vpack.c.b16 %v1200, %v1198
    %v1241 = vpack.c.b16 %v1203, %v1201
    %v1242 = vpack.c.b16 %v1204, %v1202
    %v1243 = vpack.c.b16 %v1207, %v1205
    %v1244 = vpack.c.b16 %v1208, %v1206
    %v1245 = vpack.c.b16 %v1211, %v1209
    %v1246 = vpack.c.b16 %v1212, %v1210
    %v1247 = vpack.c.b16 %v1215, %v1213
    %v1248 = vpack.c.b16 %v1216, %v1214
    %1281 = vmatprep.subr.bf16.mxu0 %v1218
    %1282 = vmatpush1.bf16.msra.mxu0 %v1217
    %1283 = vmatprep.subr.bf16.mxu0 %v1220
    %1284 = vmatpush1.bf16.msra.mxu0 %v1219
    %1285 = vmatprep.subr.bf16.mxu0 %v1222
    %1286 = vmatpush1.bf16.msra.mxu0 %v1221
    %1287 = vmatprep.subr.bf16.mxu0 %v1224
    %1288 = vmatpush1.bf16.msra.mxu0 %v1223
    %1289 = vmatprep.subr.bf16.mxu0 %v1226
    %1290 = vmatpush1.bf16.msra.mxu0 %v1225
    %1291 = vmatprep.subr.bf16.mxu0 %v1228
    %1292 = vmatpush1.bf16.msra.mxu0 %v1227
    %1293 = vmatprep.subr.bf16.mxu0 %v1230
    %1294 = vmatpush1.bf16.msra.mxu0 %v1229
    %1295 = vmatprep.subr.bf16.mxu0 %v1232
    %1296 = vmatpush1.bf16.msra.mxu0 %v1231
    %1297 = vmatprep.subr.bf16.mxu0 %v1234
    %1298 = vmatpush1.bf16.msra.mxu0 %v1233
    %1299 = vmatprep.subr.bf16.mxu0 %v1236
    %1300 = vmatpush1.bf16.msra.mxu0 %v1235
    %1301 = vmatprep.subr.bf16.mxu0 %v1238
    %1302 = vmatpush1.bf16.msra.mxu0 %v1237
    %1303 = vmatprep.subr.bf16.mxu0 %v1240
    %1304 = vmatpush1.bf16.msra.mxu0 %v1239
    %1305 = vmatprep.subr.bf16.mxu0 %v1242
    %1306 = vmatpush1.bf16.msra.mxu0 %v1241
    %1307 = vmatprep.subr.bf16.mxu0 %v1244
    %1308 = vmatpush1.bf16.msra.mxu0 %v1243
    %1309 = vmatprep.subr.bf16.mxu0 %v1246
    %1310 = vmatpush1.bf16.msra.mxu0 %v1245
    %1311 = vmatprep.subr.bf16.mxu0 %v1248
    %1312 = vmatpush1.bf16.msra.mxu0 %v1247
    %1313 = vmatprep.mubr.bf16.mxu0 %v1088
    %1314 = vmatmul.mubr.bf16.gmra.mrb[0].mxu0 %v1087
    %v1315 = vpop.f32.mrb[0].mxu0
    %v1316 = vadd.f32 0.0, %v1315
    %v1317 = vpop.f32.mrb[0].mxu0
    %v1318 = vadd.f32 0.0, %v1317
    %v1319 = vpop.f32.mrb[0].mxu0
    %v1320 = vpop.f32.mrb[0].mxu0
    %1321 = vdwg.mxu0
    %v1322 = vpack.c.bf16 %v1318, %v1318
    %v1324 = vsel %vm110, %v1322, 0
    %1326 = vmatprep.subr.bf16.mxu0 0
    %1327 = vmatpush1.bf16.msra.mxu0 %v1324
    %1328 = vmatprep.subr.bf16.mxu0 0
    %1329 = vmatpush1.bf16.msra.mxu0 0
    %1330 = vmatprep.subr.bf16.mxu0 0
    %1331 = vmatpush1.bf16.msra.mxu0 0
    %1332 = vmatprep.subr.bf16.mxu0 0
    %1333 = vmatpush1.bf16.msra.mxu0 0
    %1334 = vmatprep.subr.bf16.mxu0 0
    %1335 = vmatpush1.bf16.msra.mxu0 0
    %1336 = vmatprep.subr.bf16.mxu0 0
    %1337 = vmatpush1.bf16.msra.mxu0 0
    %1338 = vmatprep.subr.bf16.mxu0 0
    %1339 = vmatpush1.bf16.msra.mxu0 0
    %1340 = vmatprep.subr.bf16.mxu0 0
    %1341 = vmatpush1.bf16.msra.mxu0 0
    %1342 = vmatprep.subr.bf16.mxu0 0
    %1343 = vmatpush1.bf16.msra.mxu0 0
    %1344 = vmatprep.subr.bf16.mxu0 0
    %1345 = vmatpush1.bf16.msra.mxu0 0
    %1346 = vmatprep.subr.bf16.mxu0 0
    %1347 = vmatpush1.bf16.msra.mxu0 0
    %1348 = vmatprep.subr.bf16.mxu0 0
    %1349 = vmatpush1.bf16.msra.mxu0 0
    %1350 = vmatprep.subr.bf16.mxu0 0
    %1351 = vmatpush1.bf16.msra.mxu0 0
    %1352 = vmatprep.subr.bf16.mxu0 0
    %1353 = vmatpush1.bf16.msra.mxu0 0
    %1354 = vmatprep.subr.bf16.mxu0 0
    %1355 = vmatpush1.bf16.msra.mxu0 0
    %1356 = vmatprep.subr.bf16.mxu0 0
    %1357 = vmatpush1.bf16.msra.mxu0 0
    %1358 = vmatprep.mubr.bf16.mxu0 0
    %1359 = vmatmul.mubr.bf16.gmra.mrb[0].mxu0 %v108
    %v1360 = vpop.f32.mrb[0].mxu0
    %v1361 = vadd.f32 0.0, %v1360
    %v1362 = vpop.f32.mrb[0].mxu0
    %v1363 = vpop.f32.mrb[0].mxu0
    %v1364 = vpop.f32.mrb[0].mxu0
    %1365 = vdwg.mxu0
    %v1366 = vadd.f32 %v1316, %v1361
    %v1367 = vld [vmem:[#allocation7 + $0x15] ss:$0 sm:$0xff]
    %v1368 = vadd.f32 %v1366, %v1367
    %v1369 = vlaneseq
    %v1370 = vand.u32 %v1369, 127
    %vm1371 = vcmp.lt.s32.totalorder %v1370, 8
    %v1372 = vsel %vm1371, %v1368, -inf
    %1373 = vmax.xlane.f32.xlu0 %v1372
    %v1374 = vpop.xlane.xlu0 %1373
    %v1375 = vsub.f32 %v1372, %v1374
    %v1376 = vmul.f32 %v1375, 1.442695
    %v1377 = vpow.pop %v1376
    %1378 = vadd.xlane.f32.xlu0 %v1377
    %v1379 = vpop.xlane.xlu0 %1378
    %v1380 = vlog2.pop %v1379
    %v1381 = vmul.f32 %v1380, 0.6931472
    %v1382 = vsub.f32 %v1375, %v1381
    %1383 = vst [vmem:[#allocation13] sm:$0xff] %v1382
    // Predicated region
    $region50: #{tpu_custom_call.1} parent=1 // pred_check
      _
    $region51: #{tpu_custom_call.1} parent=1 // pred_check_branch
      %1385 = sbr.rel (0) target = $region53
    $region52: #{tpu_custom_call.1} parent=1 // pred_region
      %s1387 = ssub.s32 128, 128
      %1388 = vsyncadd [#allocation4], %s1387
      %s1390 = sshll.u32 [#allocation13], 4
      %s1391 = int_to_ptr.vmem [resolvable:$true] %s1390
      %1393 = dma.vmem_to_hbm [thread:$0]  %s1391, 128, %s6, [#allocation4]
    $region53: #{tpu_custom_call.1} parent=1 // pred_fallthru
      _
    // Predicated region
    $region54: #{tpu_custom_call.1} parent=1 // pred_check
      _
    $region55: #{tpu_custom_call.1} parent=1 // pred_check_branch
      %1395 = sbr.rel (0) target = $region57
    $region56: #{tpu_custom_call.1} parent=1 // pred_region
      %1396 = dma.done [#allocation4], 128
    $region57: #{tpu_custom_call.1} parent=1 // pred_fallthru
      _
    %1397 = vsyncpa [#allocation3], 1
    %1398 = vsyncpa [#allocation6], 1
    %1399 = vsyncpa [#allocation9], 1
    %1400 = vsyncpa [#allocation12], 1
    %1401 = vsyncpa [#allocation4], 1

</llo_original>
